<compile_context>
chip_gen: v5e
topology: v5e:2x2
jax: 0.10.0
libtpu: 0.0.40
codegen_flags: <defaults>
</compile_context>

<pallas_src>
import jax
import jax.numpy as jnp
from jax.experimental import pallas as pl
from jax.experimental.pallas import tpu as pltpu


def _se_scale_conv1x1_kernel(g_ref, w_ref, x_ref, o_ref, w_scaled_ref):
    # g_ref:        (1, Cin)        pre-sigmoid per-(sample-)channel gate
    # w_ref:        (Cout, Cin)     1x1-conv weight
    # x_ref:        (Cin, HW_tile)  channel-major activations (native dtype)
    # o_ref:        (Cout, HW_tile) output tile
    # w_scaled_ref: (Cout, Cin)     VMEM scratch: gate-folded weight, cached across
    #                               spatial steps of the current sample.
    @pl.when(pl.program_id(1) == 0)
    def _fold_gate():
        gate = jax.nn.sigmoid(g_ref[...].astype(jnp.float32))           # (1, Cin), f32
        w_scaled_ref[...] = (
            w_ref[...].astype(jnp.float32) * gate                       # diag(g) · W
        ).astype(w_scaled_ref.dtype)                                    # back to MXU dtype

    o_ref[...] = jnp.dot(
        w_scaled_ref[...], x_ref[...],
        preferred_element_type=jnp.float32,
    ).astype(o_ref.dtype)


def se_scale_conv1x1(x_nchw, scale_nc11, weight_oi11):
    """Fused sigmoid * mul * 1x1-conv (no bias).

    x_nchw:      (N, Cin, H, W)
    scale_nc11:  (gN, Cin, 1, 1)  pre-sigmoid gate, gN in {1, N}
    weight_oi11: (Cout, Cin, 1, 1)
    returns:     (N, Cout, H, W)
    """
    N, Cin, H, W = x_nchw.shape
    Cout = weight_oi11.shape[0]
    gN = scale_nc11.shape[0]
    HW = H * W
    out_dtype = x_nchw.dtype

    # Zero-copy layout changes only.
    x_cm = x_nchw.reshape(N, Cin, HW)            # (N, Cin, HW)
    g_3d = scale_nc11.reshape(gN, 1, Cin)        # (gN, 1, Cin)
    w_oc = weight_oi11.reshape(Cout, Cin)        # (Cout, Cin)

    # ---- spatial tile selection: lane-dense, VMEM byte-budget sized -------------
    LANE = 128
    MAX_TILE = 2048                              # amortizes ~0.35us/step overhead
    VMEM_BUDGET = 24 << 20                       # conservative across v5e/v6e/v7x

    x_isize = x_nchw.dtype.itemsize
    w_isize = weight_oi11.dtype.itemsize
    g_isize = scale_nc11.dtype.itemsize

    def _tile_bytes(t):
        # double-buffered X / OUT tiles + (double-buffered) weight and gate
        # + the (Cout, Cin) folded-weight scratch.
        return (2 * (Cin + Cout) * t * x_isize
                + 2 * Cout * Cin * w_isize
                + 2 * gN * Cin * g_isize
                + Cout * Cin * x_isize)

    hw_tile = min(max(pl.cdiv(HW, LANE) * LANE, LANE), MAX_TILE)
    while hw_tile > LANE and _tile_bytes(hw_tile) > VMEM_BUDGET:
        hw_tile -= LANE
    HW_pad = pl.cdiv(HW, hw_tile) * hw_tile

    if HW_pad != HW:
        # Padded columns are zeros -> zero outputs, sliced off below.
        x_cm = jnp.pad(x_cm, ((0, 0), (0, 0), (0, HW_pad - HW)))

    grid = (N, HW_pad // hw_tile)
    vmem_limit = int(min(max(_tile_bytes(hw_tile) + (4 << 20), 16 << 20), 48 << 20))

    # Gate row selected by the BlockSpec index_map (keeps blocks (8,128)-legal).
    if gN > 1:
        g_map = lambda n, s: (n, 0, 0)
    else:
        g_map = lambda n, s: (0, 0, 0)

    cost = pl.CostEstimate(
        flops=2 * N * Cout * Cin * HW,
        transcendentals=gN * Cin,
        bytes_accessed=(N * Cin * HW + Cout * Cin + N * Cout * HW) * x_isize,
    )

    out = pl.pallas_call(
        _se_scale_conv1x1_kernel,
        out_shape=jax.ShapeDtypeStruct((N, Cout, HW_pad), out_dtype),
        grid_spec=pltpu.PrefetchScalarGridSpec(
            num_scalar_prefetch=0,
            grid=grid,
            in_specs=[
                pl.BlockSpec((None, 1, Cin), g_map),                       # gate row
                pl.BlockSpec((Cout, Cin), lambda n, s: (0, 0)),            # weight
                pl.BlockSpec((None, Cin, hw_tile), lambda n, s: (n, 0, s)),  # activations
            ],
            out_specs=pl.BlockSpec((None, Cout, hw_tile), lambda n, s: (n, 0, s)),
            scratch_shapes=[pltpu.VMEM((Cout, Cin), out_dtype)],           # folded weight
        ),
        compiler_params=pltpu.CompilerParams(
            dimension_semantics=("parallel", "arbitrary"),
            vmem_limit_bytes=vmem_limit,
        ),
        cost_estimate=cost,
    )(g_3d, w_oc, x_cm)

    if HW_pad != HW:
        out = out[:, :, :HW]
    return out.reshape(N, Cout, H, W)


if __name__ == "__main__":
    key = jax.random.PRNGKey(0)
    k1, k2, k3, k4, k5, k6 = jax.random.split(key, 6)

    def _ref(x, g, w):
        n, cin, h, ww = x.shape
        cout = w.shape[0]
        gate = jax.nn.sigmoid(g.reshape(g.shape[0], cin, 1, 1))
        return jnp.einsum("nchw,oc->nohw", x * gate, w.reshape(cout, cin))

    # Case 1: exact module shapes — x357=(1,960,14,14), x361=(1,960,1,1),
    #         Conv2d(960, 160, 1x1, bias=False) -> weight (160, 960, 1, 1).
    N, Cin, H, W, Cout = 1, 960, 14, 14, 160
    x357 = jax.random.normal(k1, (N, Cin, H, W), dtype=jnp.float32)
    x361 = jax.random.normal(k2, (1, Cin, 1, 1), dtype=jnp.float32)
    w121 = jax.random.normal(k3, (Cout, Cin, 1, 1), dtype=jnp.float32) / (Cin ** 0.5)

    out = jax.block_until_ready(se_scale_conv1x1(x357, x361, w121))
    assert out.shape == (N, Cout, H, W)
    assert jnp.allclose(out, _ref(x357, x361, w121), atol=1e-3, rtol=1e-3)

    # Case 2: batched input with a per-sample gate (exercises gN > 1 path + batch grid).
    N2, C2, H2, W2, Co2 = 2, 256, 16, 16, 64
    x2 = jax.random.normal(k4, (N2, C2, H2, W2), dtype=jnp.float32)
    g2 = jax.random.normal(k5, (N2, C2, 1, 1), dtype=jnp.float32)
    w2 = jax.random.normal(k6, (Co2, C2, 1, 1), dtype=jnp.float32) / (C2 ** 0.5)

    out2 = jax.block_until_ready(se_scale_conv1x1(x2, g2, w2))
    assert out2.shape == (N2, Co2, H2, W2)
    assert jnp.allclose(out2, _ref(x2, g2, w2), atol=1e-3, rtol=1e-3)

    print("KERNEL_OK")
</pallas_src>

<mosaic_0001>
module attributes {stable_mosaic.version = 11 : i64} {
  func.func @_se_scale_conv1x1_kernel(%arg0: i32, %arg1: i32, %arg2: memref<1x1x960xf32, #tpu.memory_space<vmem>>, %arg3: memref<160x960xf32, #tpu.memory_space<vmem>>, %arg4: memref<1x960x256xf32, #tpu.memory_space<vmem>>, %arg5: memref<1x160x256xf32, #tpu.memory_space<vmem>>, %arg6: memref<160x960xf32, #tpu.memory_space<vmem>>) attributes {dimension_semantics = [#tpu.dimension_semantics<parallel>, #tpu.dimension_semantics<arbitrary>], iteration_bounds = array<i64: 1, 1>, scalar_prefetch = 0 : i64, scratch_operands = 1 : i64, tpu.core_type = #tpu.core_type<tc>, window_params = [{pipeline_mode = #tpu.pipeline_mode<synchronous>, transform_indices = @transform_0, window_bounds = array<i64: 1, 1, 960>}, {pipeline_mode = #tpu.pipeline_mode<synchronous>, transform_indices = @transform_1, window_bounds = array<i64: 160, 960>}, {transform_indices = @transform_2, window_bounds = array<i64: 1, 960, 256>}, {transform_indices = @transform_3, window_bounds = array<i64: 1, 160, 256>}]} {
    %c0_i32 = arith.constant 0 : i32
    %0 = arith.cmpi eq, %arg1, %c0_i32 : i32
    %1 = arith.extui %0 : i1 to i32
    %c0_i32_0 = arith.constant 0 : i32
    %2 = arith.cmpi ne, %1, %c0_i32_0 : i32
    scf.if %2 {
      %c0_8 = arith.constant 0 : index
      %c0_9 = arith.constant 0 : index
      %c0_10 = arith.constant 0 : index
      %10 = vector.load %arg2[%c0_8, %c0_9, %c0_10] : memref<1x1x960xf32, #tpu.memory_space<vmem>>, vector<1x1x960xf32>
      %11 = vector.shape_cast %10 : vector<1x1x960xf32> to vector<1x960xf32>
      %12 = arith.negf %11 : vector<1x960xf32>
      %13 = math.exp %12 : vector<1x960xf32>
      %cst_11 = arith.constant 1.000000e+00 : f32
      %14 = vector.broadcast %cst_11 : f32 to vector<1x960xf32>
      %15 = arith.addf %14, %13 : vector<1x960xf32>
      %16 = arith.divf %14, %15 : vector<1x960xf32>
      %c0_12 = arith.constant 0 : index
      %c0_13 = arith.constant 0 : index
      %17 = vector.load %arg3[%c0_12, %c0_13] : memref<160x960xf32, #tpu.memory_space<vmem>>, vector<160x960xf32>
      %18 = vector.broadcast %16 : vector<1x960xf32> to vector<160x960xf32>
      %19 = arith.mulf %17, %18 : vector<160x960xf32>
      %c0_14 = arith.constant 0 : index
      %c0_15 = arith.constant 0 : index
      %20 = vector.load %arg6[%c0_14, %c0_15] : memref<160x960xf32, #tpu.memory_space<vmem>>, vector<160x960xf32>
      tpu.vector_store %arg6[%c0_14, %c0_15], %19 {strides = array<i32>} : memref<160x960xf32, #tpu.memory_space<vmem>>, vector<160x960xf32>,
    } else {
    }
    %c0 = arith.constant 0 : index
    %c0_1 = arith.constant 0 : index
    %3 = vector.load %arg6[%c0, %c0_1] : memref<160x960xf32, #tpu.memory_space<vmem>>, vector<160x960xf32>
    %c0_2 = arith.constant 0 : index
    %c0_3 = arith.constant 0 : index
    %c0_4 = arith.constant 0 : index
    %4 = vector.load %arg4[%c0_2, %c0_3, %c0_4] : memref<1x960x256xf32, #tpu.memory_space<vmem>>, vector<1x960x256xf32>
    %5 = vector.shape_cast %4 : vector<1x960x256xf32> to vector<960x256xf32>
    %cst = arith.constant dense<0.000000e+00> : vector<160x256xf32>
    %6 = tpu.matmul %3, %5, %cst {dimension_numbers = #tpu.dot_dimension_numbers<[1], [0], [0], [1], [0, 0, 1, 1], [], []>} : vector<160x960xf32>, vector<960x256xf32>, vector<160x256xf32> -> vector<160x256xf32>
    %c0_5 = arith.constant 0 : index
    %c0_6 = arith.constant 0 : index
    %c0_7 = arith.constant 0 : index
    %7 = vector.load %arg5[%c0_5, %c0_6, %c0_7] : memref<1x160x256xf32, #tpu.memory_space<vmem>>, vector<1x160x256xf32>
    %8 = vector.shape_cast %7 : vector<1x160x256xf32> to vector<160x256xf32>
    %9 = vector.shape_cast %6 : vector<160x256xf32> to vector<1x160x256xf32>
    tpu.vector_store %arg5[%c0_5, %c0_6, %c0_7], %9 {strides = array<i32>} : memref<1x160x256xf32, #tpu.memory_space<vmem>>, vector<1x160x256xf32>,
    return
  }
  func.func @transform_0(%arg0: i32, %arg1: i32) -> (i32, i32, i32) {
    %c0_i32 = arith.constant 0 : i32
    %c0_i32_0 = arith.constant 0 : i32
    %c0_i32_1 = arith.constant 0 : i32
    %c0_i32_2 = arith.constant 0 : i32
    return %c0_i32, %c0_i32_0, %c0_i32_1 : i32, i32, i32
  }
  func.func @transform_1(%arg0: i32, %arg1: i32) -> (i32, i32) {
    %c0_i32 = arith.constant 0 : i32
    %c0_i32_0 = arith.constant 0 : i32
    %c0_i32_1 = arith.constant 0 : i32
    return %c0_i32, %c0_i32_0 : i32, i32
  }
  func.func @transform_2(%arg0: i32, %arg1: i32) -> (i32, i32, i32) {
    %c0_i32 = arith.constant 0 : i32
    %c0_i32_0 = arith.constant 0 : i32
    return %arg0, %c0_i32, %arg1 : i32, i32, i32
  }
  func.func @transform_3(%arg0: i32, %arg1: i32) -> (i32, i32, i32) {
    %c0_i32 = arith.constant 0 : i32
    %c0_i32_0 = arith.constant 0 : i32
    return %arg0, %c0_i32, %arg1 : i32, i32, i32
  }
}

</mosaic_0001>

<llo_original>
// kernel: tpu_custom_call.1
$region0: #{tpu_custom_call.1}
  #allocation0 [shape = 'u32[]', space=smem, size = 0x4, offset = 0x4, fixed_abs, tag = 'smem constant byte address 0x4 - core index']
  #allocation1 [shape = 'u32[72,128]{1,0:T(1,128)}', space=vmem, size = 0x9000, scoped, tag = 'internal scratch']
  #allocation2 [shape = 'f32[160,960]{1,0:T(8,128)}', space=vmem, size = 0xa0000, scoped, tag = 'scratch operand']
  %s0 = inlined_call_operand.hbm [shape: f32[1,1,960], index: 0, kind: input, shape index: {}]
  %s1 = inlined_call_operand.hbm [shape: f32[160,960], index: 1, kind: input, shape index: {}]
  %s2 = inlined_call_operand.hbm [shape: f32[1,960,256], index: 2, kind: input, shape index: {}]
  %s3 = inlined_call_operand.hbm [shape: f32[1,160,256], index: 3, kind: output, shape index: {}]
  %s4 = sld [smem:[#allocation0]]
  $region38: #{tpu_custom_call.1} parent=0
    _
  %s6 = ssub.s32 1, %s4
  %s7 = scalar_select 0, %s6, %s4
  $region1: #{tpu_custom_call.1} parent=0
    #allocation3 [shape = 'u8[4096]{0}', space=vmem, size = 0x1000, scoped, tag = 'input window, operand 0, single buffered']
    #allocation4 [shape = 's32[1]{0}', space=sflag, size = 0x4, scoped, tag = 'scoped memory for tpu_custom_call.1']
    #allocation5 [shape = 's32[1]{0}', space=sflag, size = 0x4, scoped, tag = 'scoped memory for tpu_custom_call.1']
    #allocation6 [shape = 'u8[655360]{0}', space=vmem, size = 0xa0000, scoped, tag = 'input window, operand 1, single buffered']
    #allocation7 [shape = 's32[1]{0}', space=sflag, size = 0x4, scoped, tag = 'scoped memory for tpu_custom_call.1']
    #allocation8 [shape = 'u8[983040]{0}', space=vmem, size = 0xf0000, scoped, tag = 'input window, operand 2, single buffered']
    #allocation9 [shape = 'u8[163840]{0}', space=vmem, size = 0x28000, scoped, tag = 'output window, operand 0, single buffered']
    %8 = vsyncpa [#allocation4], 0
    %9 = vsyncpa [#allocation7], 0
    %10 = vsyncpa [#allocation5], 0
    // Predicated region
    $region2: #{tpu_custom_call.1} parent=1 // pred_check
      _
    $region3: #{tpu_custom_call.1} parent=1 // pred_check_branch
      %12 = sbr.rel (0) target = $region5
    $region4: #{tpu_custom_call.1} parent=1 // pred_region
      %14 = vsyncadd [#allocation4], 0
      %s16 = sshll.u32 %s0, 4
      %s17 = int_to_ptr.hbm [resolvable:$true] %s16
      %s18 = sshll.u32 [#allocation3], 4
      %s19 = int_to_ptr.vmem [resolvable:$true] %s18
      %21 = dma.hbm_to_vmem [thread:$0]  %s17, 128, %s19, [#allocation4]
    $region5: #{tpu_custom_call.1} parent=1 // pred_fallthru
      _
    // Predicated region
    $region6: #{tpu_custom_call.1} parent=1 // pred_check
      _
    $region7: #{tpu_custom_call.1} parent=1 // pred_check_branch
      %23 = sbr.rel (0) target = $region9
    $region8: #{tpu_custom_call.1} parent=1 // pred_region
      %25 = vsyncadd [#allocation7], 0
      %s26 = sshll.u32 %s1, 4
      %s27 = int_to_ptr.hbm [resolvable:$true] %s26
      %s28 = sshll.u32 [#allocation6], 4
      %s29 = int_to_ptr.vmem [resolvable:$true] %s28
      %34 = dma.hbm_to_vmem [thread:$0]  %s27, 20480, %s29, [#allocation7], 1024, 1024, 64
    $region9: #{tpu_custom_call.1} parent=1 // pred_fallthru
      _
    // Predicated region
    $region10: #{tpu_custom_call.1} parent=1 // pred_check
      _
    $region11: #{tpu_custom_call.1} parent=1 // pred_check_branch
      %36 = sbr.rel (0) target = $region13
    $region12: #{tpu_custom_call.1} parent=1 // pred_region
      %38 = vsyncadd [#allocation7], 0
      %s39 = sshll.u32 %s2, 4
      %s40 = int_to_ptr.hbm [resolvable:$true] %s39
      %s41 = sshll.u32 [#allocation8], 4
      %s42 = int_to_ptr.vmem [resolvable:$true] %s41
      %47 = dma.hbm_to_vmem [thread:$0]  %s40, 30720, %s42, [#allocation7], 256, 256, 16
    $region13: #{tpu_custom_call.1} parent=1 // pred_fallthru
      _
    // Predicated region
    $region14: #{tpu_custom_call.1} parent=1 // pred_check
      _
    $region15: #{tpu_custom_call.1} parent=1 // pred_check_branch
      %49 = sbr.rel (0) target = $region17
    $region16: #{tpu_custom_call.1} parent=1 // pred_region
      %51 = dma.done [#allocation4], 128
    $region17: #{tpu_custom_call.1} parent=1 // pred_fallthru
      _
    // Predicated region
    $region18: #{tpu_custom_call.1} parent=1 // pred_check
      _
    $region19: #{tpu_custom_call.1} parent=1 // pred_check_branch
      %53 = sbr.rel (0) target = $region21
    $region20: #{tpu_custom_call.1} parent=1 // pred_region
      %55 = dma.done [#allocation7], 20480
    $region21: #{tpu_custom_call.1} parent=1 // pred_fallthru
      _
    // Predicated region
    $region22: #{tpu_custom_call.1} parent=1 // pred_check
      _
    $region23: #{tpu_custom_call.1} parent=1 // pred_check_branch
      %57 = sbr.rel (0) target = $region25
    $region24: #{tpu_custom_call.1} parent=1 // pred_region
      %59 = dma.done [#allocation7], 30720
    $region25: #{tpu_custom_call.1} parent=1 // pred_fallthru
      _
    %p60 = scmp.eq.s32.totalorder 0, 0
    // Predicated region
    $region26: #{tpu_custom_call.1} parent=1 // pred_check
      %p61 = pneg %p60
    $region27: #{tpu_custom_call.1} parent=1 // pred_check_branch
      %63 = sbr.rel (%p61) target = $region29
    $region28: #{tpu_custom_call.1} parent=1 // pred_region
      %v64 = vld [vmem:[#allocation3] sm:$0xff]
      %v65 = vxor.u32 %v64, 2147483648
      %v66 = vmul.f32 %v65, 1.442695
      %v67 = vpow.pop %v66
      %v68 = vadd.f32 %v67, 1.0
      %v69 = vrcp.pop %v68
      %v70 = vmul.f32 %v68, %v69
      %v71 = vsub.f32 1.0, %v70
      %v72 = vmul.f32 %v69, %v71
      %v73 = vadd.f32 %v69, %v72
      %vm74 = vweird.f32 %v68
      %vm75 = vweird.f32 %v69
      %vm76 = vmor %vm74, %vm75
      %v77 = vsel %vm76, %v69, %v73
      %v78 = vand.u32 2147483647, %v68
      %vm79 = vcmp.eq.f32.partialorder %v78, 8.507059e+37
      %v80 = vand.u32 %v68, 2147483648
      %v81 = vor.u32 1.1754944e-38, %v80
      %v82 = vsel %vm79, %v81, %v77
      %v83 = vmul.f32 1.0, %v82
      %v84 = vld [vmem:[#allocation6] sm:$0xff]
      %v85 = vld [vmem:[#allocation6 + $0x8] sm:$0xff]
      %v86 = vld [vmem:[#allocation6 + $0x10] sm:$0xff]
      %v87 = vld [vmem:[#allocation6 + $0x18] sm:$0xff]
      %v88 = vld [vmem:[#allocation6 + $0x20] sm:$0xff]
      %v89 = vld [vmem:[#allocation6 + $0x28] sm:$0xff]
      %v90 = vld [vmem:[#allocation6 + $0x30] sm:$0xff]
      %v91 = vld [vmem:[#allocation6 + $0x38] sm:$0xff]
      %v92 = vld [vmem:[#allocation6 + $0x40] sm:$0xff]
      %v93 = vld [vmem:[#allocation6 + $0x48] sm:$0xff]
      %v94 = vld [vmem:[#allocation6 + $0x50] sm:$0xff]
      %v95 = vld [vmem:[#allocation6 + $0x58] sm:$0xff]
      %v96 = vld [vmem:[#allocation6 + $0x60] sm:$0xff]
      %v97 = vld [vmem:[#allocation6 + $0x68] sm:$0xff]
      %v98 = vld [vmem:[#allocation6 + $0x70] sm:$0xff]
      %v99 = vld [vmem:[#allocation6 + $0x78] sm:$0xff]
      %v100 = vld [vmem:[#allocation6 + $0x80] sm:$0xff]
      %v101 = vld [vmem:[#allocation6 + $0x88] sm:$0xff]
      %v102 = vld [vmem:[#allocation6 + $0x90] sm:$0xff]
      %v103 = vld [vmem:[#allocation6 + $0x98] sm:$0xff]
      %v104 = vld [vmem:[#allocation6 + $0xa0] sm:$0xff]
      %v105 = vld [vmem:[#allocation6 + $0xa8] sm:$0xff]
      %v106 = vld [vmem:[#allocation6 + $0xb0] sm:$0xff]
      %v107 = vld [vmem:[#allocation6 + $0xb8] sm:$0xff]
      %v108 = vld [vmem:[#allocation6 + $0xc0] sm:$0xff]
      %v109 = vld [vmem:[#allocation6 + $0xc8] sm:$0xff]
      %v110 = vld [vmem:[#allocation6 + $0xd0] sm:$0xff]
      %v111 = vld [vmem:[#allocation6 + $0xd8] sm:$0xff]
      %v112 = vld [vmem:[#allocation6 + $0xe0] sm:$0xff]
      %v113 = vld [vmem:[#allocation6 + $0xe8] sm:$0xff]
      %v114 = vld [vmem:[#allocation6 + $0xf0] sm:$0xff]
      %v115 = vld [vmem:[#allocation6 + $0xf8] sm:$0xff]
      %v116 = vld [vmem:[#allocation6 + $0x100] sm:$0xff]
      %v117 = vld [vmem:[#allocation6 + $0x108] sm:$0xff]
      %v118 = vld [vmem:[#allocation6 + $0x110] sm:$0xff]
      %v119 = vld [vmem:[#allocation6 + $0x118] sm:$0xff]
      %v120 = vld [vmem:[#allocation6 + $0x120] sm:$0xff]
      %v121 = vld [vmem:[#allocation6 + $0x128] sm:$0xff]
      %v122 = vld [vmem:[#allocation6 + $0x130] sm:$0xff]
      %v123 = vld [vmem:[#allocation6 + $0x138] sm:$0xff]
      %v124 = vld [vmem:[#allocation6 + $0x140] sm:$0xff]
      %v125 = vld [vmem:[#allocation6 + $0x148] sm:$0xff]
      %v126 = vld [vmem:[#allocation6 + $0x150] sm:$0xff]
      %v127 = vld [vmem:[#allocation6 + $0x158] sm:$0xff]
      %v128 = vld [vmem:[#allocation6 + $0x160] sm:$0xff]
      %v129 = vld [vmem:[#allocation6 + $0x168] sm:$0xff]
      %v130 = vld [vmem:[#allocation6 + $0x170] sm:$0xff]
      %v131 = vld [vmem:[#allocation6 + $0x178] sm:$0xff]
      %v132 = vld [vmem:[#allocation6 + $0x180] sm:$0xff]
      %v133 = vld [vmem:[#allocation6 + $0x188] sm:$0xff]
      %v134 = vld [vmem:[#allocation6 + $0x190] sm:$0xff]
      %v135 = vld [vmem:[#allocation6 + $0x198] sm:$0xff]
      %v136 = vld [vmem:[#allocation6 + $0x1a0] sm:$0xff]
      %v137 = vld [vmem:[#allocation6 + $0x1a8] sm:$0xff]
      %v138 = vld [vmem:[#allocation6 + $0x1b0] sm:$0xff]
      %v139 = vld [vmem:[#allocation6 + $0x1b8] sm:$0xff]
      %v140 = vld [vmem:[#allocation6 + $0x1c0] sm:$0xff]
      %v141 = vld [vmem:[#allocation6 + $0x1c8] sm:$0xff]
      %v142 = vld [vmem:[#allocation6 + $0x1d0] sm:$0xff]
      %v143 = vld [vmem:[#allocation6 + $0x1d8] sm:$0xff]
      %v144 = vld [vmem:[#allocation6 + $0x1e0] sm:$0xff]
      %v145 = vld [vmem:[#allocation6 + $0x1e8] sm:$0xff]
      %v146 = vld [vmem:[#allocation6 + $0x1f0] sm:$0xff]
      %v147 = vld [vmem:[#allocation6 + $0x1f8] sm:$0xff]
      %v148 = vld [vmem:[#allocation6 + $0x200] sm:$0xff]
      %v149 = vld [vmem:[#allocation6 + $0x208] sm:$0xff]
      %v150 = vld [vmem:[#allocation6 + $0x210] sm:$0xff]
      %v151 = vld [vmem:[#allocation6 + $0x218] sm:$0xff]
      %v152 = vld [vmem:[#allocation6 + $0x220] sm:$0xff]
      %v153 = vld [vmem:[#allocation6 + $0x228] sm:$0xff]
      %v154 = vld [vmem:[#allocation6 + $0x230] sm:$0xff]
      %v155 = vld [vmem:[#allocation6 + $0x238] sm:$0xff]
      %v156 = vld [vmem:[#allocation6 + $0x240] sm:$0xff]
      %v157 = vld [vmem:[#allocation6 + $0x248] sm:$0xff]
      %v158 = vld [vmem:[#allocation6 + $0x250] sm:$0xff]
      %v159 = vld [vmem:[#allocation6 + $0x258] sm:$0xff]
      %v160 = vld [vmem:[#allocation6 + $0x260] sm:$0xff]
      %v161 = vld [vmem:[#allocation6 + $0x268] sm:$0xff]
      %v162 = vld [vmem:[#allocation6 + $0x270] sm:$0xff]
      %v163 = vld [vmem:[#allocation6 + $0x278] sm:$0xff]
      %v164 = vld [vmem:[#allocation6 + $0x280] sm:$0xff]
      %v165 = vld [vmem:[#allocation6 + $0x288] sm:$0xff]
      %v166 = vld [vmem:[#allocation6 + $0x290] sm:$0xff]
      %v167 = vld [vmem:[#allocation6 + $0x298] sm:$0xff]
      %v168 = vld [vmem:[#allocation6 + $0x2a0] sm:$0xff]
      %v169 = vld [vmem:[#allocation6 + $0x2a8] sm:$0xff]
      %v170 = vld [vmem:[#allocation6 + $0x2b0] sm:$0xff]
      %v171 = vld [vmem:[#allocation6 + $0x2b8] sm:$0xff]
      %v172 = vld [vmem:[#allocation6 + $0x2c0] sm:$0xff]
      %v173 = vld [vmem:[#allocation6 + $0x2c8] sm:$0xff]
      %v174 = vld [vmem:[#allocation6 + $0x2d0] sm:$0xff]
      %v175 = vld [vmem:[#allocation6 + $0x2d8] sm:$0xff]
      %v176 = vld [vmem:[#allocation6 + $0x2e0] sm:$0xff]
      %v177 = vld [vmem:[#allocation6 + $0x2e8] sm:$0xff]
      %v178 = vld [vmem:[#allocation6 + $0x2f0] sm:$0xff]
      %v179 = vld [vmem:[#allocation6 + $0x2f8] sm:$0xff]
      %v180 = vld [vmem:[#allocation6 + $0x300] sm:$0xff]
      %v181 = vld [vmem:[#allocation6 + $0x308] sm:$0xff]
      %v182 = vld [vmem:[#allocation6 + $0x310] sm:$0xff]
      %v183 = vld [vmem:[#allocation6 + $0x318] sm:$0xff]
      %v184 = vld [vmem:[#allocation6 + $0x320] sm:$0xff]
      %v185 = vld [vmem:[#allocation6 + $0x328] sm:$0xff]
      %v186 = vld [vmem:[#allocation6 + $0x330] sm:$0xff]
      %v187 = vld [vmem:[#allocation6 + $0x338] sm:$0xff]
      %v188 = vld [vmem:[#allocation6 + $0x340] sm:$0xff]
      %v189 = vld [vmem:[#allocation6 + $0x348] sm:$0xff]
      %v190 = vld [vmem:[#allocation6 + $0x350] sm:$0xff]
      %v191 = vld [vmem:[#allocation6 + $0x358] sm:$0xff]
      %v192 = vld [vmem:[#allocation6 + $0x360] sm:$0xff]
      %v193 = vld [vmem:[#allocation6 + $0x368] sm:$0xff]
      %v194 = vld [vmem:[#allocation6 + $0x370] sm:$0xff]
      %v195 = vld [vmem:[#allocation6 + $0x378] sm:$0xff]
      %v196 = vld [vmem:[#allocation6 + $0x380] sm:$0xff]
      %v197 = vld [vmem:[#allocation6 + $0x388] sm:$0xff]
      %v198 = vld [vmem:[#allocation6 + $0x390] sm:$0xff]
      %v199 = vld [vmem:[#allocation6 + $0x398] sm:$0xff]
      %v200 = vld [vmem:[#allocation6 + $0x3a0] sm:$0xff]
      %v201 = vld [vmem:[#allocation6 + $0x3a8] sm:$0xff]
      %v202 = vld [vmem:[#allocation6 + $0x3b0] sm:$0xff]
      %v203 = vld [vmem:[#allocation6 + $0x3b8] sm:$0xff]
      %v204 = vld [vmem:[#allocation6 + $0x3c0] sm:$0xff]
      %v205 = vld [vmem:[#allocation6 + $0x3c8] sm:$0xff]
      %v206 = vld [vmem:[#allocation6 + $0x3d0] sm:$0xff]
      %v207 = vld [vmem:[#allocation6 + $0x3d8] sm:$0xff]
      %v208 = vld [vmem:[#allocation6 + $0x3e0] sm:$0xff]
      %v209 = vld [vmem:[#allocation6 + $0x3e8] sm:$0xff]
      %v210 = vld [vmem:[#allocation6 + $0x3f0] sm:$0xff]
      %v211 = vld [vmem:[#allocation6 + $0x3f8] sm:$0xff]
      %v212 = vld [vmem:[#allocation6 + $0x400] sm:$0xff]
      %v213 = vld [vmem:[#allocation6 + $0x408] sm:$0xff]
      %v214 = vld [vmem:[#allocation6 + $0x410] sm:$0xff]
      %v215 = vld [vmem:[#allocation6 + $0x418] sm:$0xff]
      %v216 = vld [vmem:[#allocation6 + $0x420] sm:$0xff]
      %v217 = vld [vmem:[#allocation6 + $0x428] sm:$0xff]
      %v218 = vld [vmem:[#allocation6 + $0x430] sm:$0xff]
      %v219 = vld [vmem:[#allocation6 + $0x438] sm:$0xff]
      %v220 = vld [vmem:[#allocation6 + $0x440] sm:$0xff]
      %v221 = vld [vmem:[#allocation6 + $0x448] sm:$0xff]
      %v222 = vld [vmem:[#allocation6 + $0x450] sm:$0xff]
      %v223 = vld [vmem:[#allocation6 + $0x458] sm:$0xff]
      %v224 = vld [vmem:[#allocation6 + $0x460] sm:$0xff]
      %v225 = vld [vmem:[#allocation6 + $0x468] sm:$0xff]
      %v226 = vld [vmem:[#allocation6 + $0x470] sm:$0xff]
      %v227 = vld [vmem:[#allocation6 + $0x478] sm:$0xff]
      %v228 = vld [vmem:[#allocation6 + $0x480] sm:$0xff]
      %v229 = vld [vmem:[#allocation6 + $0x488] sm:$0xff]
      %v230 = vld [vmem:[#allocation6 + $0x490] sm:$0xff]
      %v231 = vld [vmem:[#allocation6 + $0x498] sm:$0xff]
      %v232 = vld [vmem:[#allocation6 + $0x4a0] sm:$0xff]
      %v233 = vld [vmem:[#allocation6 + $0x4a8] sm:$0xff]
      %v234 = vld [vmem:[#allocation6 + $0x4b0] sm:$0xff]
      %v235 = vld [vmem:[#allocation6 + $0x4b8] sm:$0xff]
      %v236 = vld [vmem:[#allocation6 + $0x4c0] sm:$0xff]
      %v237 = vld [vmem:[#allocation6 + $0x4c8] sm:$0xff]
      %v238 = vld [vmem:[#allocation6 + $0x4d0] sm:$0xff]
      %v239 = vld [vmem:[#allocation6 + $0x4d8] sm:$0xff]
      %v240 = vld [vmem:[#allocation6 + $0x4e0] sm:$0xff]
      %v241 = vld [vmem:[#allocation6 + $0x4e8] sm:$0xff]
      %v242 = vld [vmem:[#allocation6 + $0x4f0] sm:$0xff]
      %v243 = vld [vmem:[#allocation6 + $0x4f8] sm:$0xff]
      %v245 = vperm.slane %v83, 0
      %v246 = vperm.slane %v83, 1
      %v247 = vperm.slane %v83, 2
      %v248 = vperm.slane %v83, 3
      %v249 = vperm.slane %v83, 4
      %v250 = vperm.slane %v83, 5
      %v251 = vperm.slane %v83, 6
      %v252 = vperm.slane %v83, 7
      %v261 = vmul.f32 %v84, %v245
      %v262 = vmul.f32 %v85, %v246
      %v263 = vmul.f32 %v86, %v247
      %v264 = vmul.f32 %v87, %v248
      %v265 = vmul.f32 %v88, %v249
      %v266 = vmul.f32 %v89, %v250
      %v267 = vmul.f32 %v90, %v251
      %v268 = vmul.f32 %v91, %v252
      %v269 = vmul.f32 %v92, %v245
      %v270 = vmul.f32 %v93, %v246
      %v271 = vmul.f32 %v94, %v247
      %v272 = vmul.f32 %v95, %v248
      %v273 = vmul.f32 %v96, %v249
      %v274 = vmul.f32 %v97, %v250
      %v275 = vmul.f32 %v98, %v251
      %v276 = vmul.f32 %v99, %v252
      %v277 = vmul.f32 %v100, %v245
      %v278 = vmul.f32 %v101, %v246
      %v279 = vmul.f32 %v102, %v247
      %v280 = vmul.f32 %v103, %v248
      %v281 = vmul.f32 %v104, %v249
      %v282 = vmul.f32 %v105, %v250
      %v283 = vmul.f32 %v106, %v251
      %v284 = vmul.f32 %v107, %v252
      %v285 = vmul.f32 %v108, %v245
      %v286 = vmul.f32 %v109, %v246
      %v287 = vmul.f32 %v110, %v247
      %v288 = vmul.f32 %v111, %v248
      %v289 = vmul.f32 %v112, %v249
      %v290 = vmul.f32 %v113, %v250
      %v291 = vmul.f32 %v114, %v251
      %v292 = vmul.f32 %v115, %v252
      %v293 = vmul.f32 %v116, %v245
      %v294 = vmul.f32 %v117, %v246
      %v295 = vmul.f32 %v118, %v247
      %v296 = vmul.f32 %v119, %v248
      %v297 = vmul.f32 %v120, %v249
      %v298 = vmul.f32 %v121, %v250
      %v299 = vmul.f32 %v122, %v251
      %v300 = vmul.f32 %v123, %v252
      %v301 = vmul.f32 %v124, %v245
      %v302 = vmul.f32 %v125, %v246
      %v303 = vmul.f32 %v126, %v247
      %v304 = vmul.f32 %v127, %v248
      %v305 = vmul.f32 %v128, %v249
      %v306 = vmul.f32 %v129, %v250
      %v307 = vmul.f32 %v130, %v251
      %v308 = vmul.f32 %v131, %v252
      %v309 = vmul.f32 %v132, %v245
      %v310 = vmul.f32 %v133, %v246
      %v311 = vmul.f32 %v134, %v247
      %v312 = vmul.f32 %v135, %v248
      %v313 = vmul.f32 %v136, %v249
      %v314 = vmul.f32 %v137, %v250
      %v315 = vmul.f32 %v138, %v251
      %v316 = vmul.f32 %v139, %v252
      %v317 = vmul.f32 %v140, %v245
      %v318 = vmul.f32 %v141, %v246
      %v319 = vmul.f32 %v142, %v247
      %v320 = vmul.f32 %v143, %v248
      %v321 = vmul.f32 %v144, %v249
      %v322 = vmul.f32 %v145, %v250
      %v323 = vmul.f32 %v146, %v251
      %v324 = vmul.f32 %v147, %v252
      %v325 = vmul.f32 %v148, %v245
      %v326 = vmul.f32 %v149, %v246
      %v327 = vmul.f32 %v150, %v247
      %v328 = vmul.f32 %v151, %v248
      %v329 = vmul.f32 %v152, %v249
      %v330 = vmul.f32 %v153, %v250
      %v331 = vmul.f32 %v154, %v251
      %v332 = vmul.f32 %v155, %v252
      %v333 = vmul.f32 %v156, %v245
      %v334 = vmul.f32 %v157, %v246
      %v335 = vmul.f32 %v158, %v247
      %v336 = vmul.f32 %v159, %v248
      %v337 = vmul.f32 %v160, %v249
      %v338 = vmul.f32 %v161, %v250
      %v339 = vmul.f32 %v162, %v251
      %v340 = vmul.f32 %v163, %v252
      %v341 = vmul.f32 %v164, %v245
      %v342 = vmul.f32 %v165, %v246
      %v343 = vmul.f32 %v166, %v247
      %v344 = vmul.f32 %v167, %v248
      %v345 = vmul.f32 %v168, %v249
      %v346 = vmul.f32 %v169, %v250
      %v347 = vmul.f32 %v170, %v251
      %v348 = vmul.f32 %v171, %v252
      %v349 = vmul.f32 %v172, %v245
      %v350 = vmul.f32 %v173, %v246
      %v351 = vmul.f32 %v174, %v247
      %v352 = vmul.f32 %v175, %v248
      %v353 = vmul.f32 %v176, %v249
      %v354 = vmul.f32 %v177, %v250
      %v355 = vmul.f32 %v178, %v251
      %v356 = vmul.f32 %v179, %v252
      %v357 = vmul.f32 %v180, %v245
      %v358 = vmul.f32 %v181, %v246
      %v359 = vmul.f32 %v182, %v247
      %v360 = vmul.f32 %v183, %v248
      %v361 = vmul.f32 %v184, %v249
      %v362 = vmul.f32 %v185, %v250
      %v363 = vmul.f32 %v186, %v251
      %v364 = vmul.f32 %v187, %v252
      %v365 = vmul.f32 %v188, %v245
      %v366 = vmul.f32 %v189, %v246
      %v367 = vmul.f32 %v190, %v247
      %v368 = vmul.f32 %v191, %v248
      %v369 = vmul.f32 %v192, %v249
      %v370 = vmul.f32 %v193, %v250
      %v371 = vmul.f32 %v194, %v251
      %v372 = vmul.f32 %v195, %v252
      %v373 = vmul.f32 %v196, %v245
      %v374 = vmul.f32 %v197, %v246
      %v375 = vmul.f32 %v198, %v247
      %v376 = vmul.f32 %v199, %v248
      %v377 = vmul.f32 %v200, %v249
      %v378 = vmul.f32 %v201, %v250
      %v379 = vmul.f32 %v202, %v251
      %v380 = vmul.f32 %v203, %v252
      %v381 = vmul.f32 %v204, %v245
      %v382 = vmul.f32 %v205, %v246
      %v383 = vmul.f32 %v206, %v247
      %v384 = vmul.f32 %v207, %v248
      %v385 = vmul.f32 %v208, %v249
      %v386 = vmul.f32 %v209, %v250
      %v387 = vmul.f32 %v210, %v251
      %v388 = vmul.f32 %v211, %v252
      %v389 = vmul.f32 %v212, %v245
      %v390 = vmul.f32 %v213, %v246
      %v391 = vmul.f32 %v214, %v247
      %v392 = vmul.f32 %v215, %v248
      %v393 = vmul.f32 %v216, %v249
      %v394 = vmul.f32 %v217, %v250
      %v395 = vmul.f32 %v218, %v251
      %v396 = vmul.f32 %v219, %v252
      %v397 = vmul.f32 %v220, %v245
      %v398 = vmul.f32 %v221, %v246
      %v399 = vmul.f32 %v222, %v247
      %v400 = vmul.f32 %v223, %v248
      %v401 = vmul.f32 %v224, %v249
      %v402 = vmul.f32 %v225, %v250
      %v403 = vmul.f32 %v226, %v251
      %v404 = vmul.f32 %v227, %v252
      %v405 = vmul.f32 %v228, %v245
      %v406 = vmul.f32 %v229, %v246
      %v407 = vmul.f32 %v230, %v247
      %v408 = vmul.f32 %v231, %v248
      %v409 = vmul.f32 %v232, %v249
      %v410 = vmul.f32 %v233, %v250
      %v411 = vmul.f32 %v234, %v251
      %v412 = vmul.f32 %v235, %v252
      %v413 = vmul.f32 %v236, %v245
      %v414 = vmul.f32 %v237, %v246
      %v415 = vmul.f32 %v238, %v247
      %v416 = vmul.f32 %v239, %v248
      %v417 = vmul.f32 %v240, %v249
      %v418 = vmul.f32 %v241, %v250
      %v419 = vmul.f32 %v242, %v251
      %v420 = vmul.f32 %v243, %v252
      %421 = vst [vmem:[#allocation2] sm:$0xff] %v261
      %422 = vst [vmem:[#allocation2 + $0x8] sm:$0xff] %v262
      %423 = vst [vmem:[#allocation2 + $0x10] sm:$0xff] %v263
      %424 = vst [vmem:[#allocation2 + $0x18] sm:$0xff] %v264
      %425 = vst [vmem:[#allocation2 + $0x20] sm:$0xff] %v265
      %426 = vst [vmem:[#allocation2 + $0x28] sm:$0xff] %v266
      %427 = vst [vmem:[#allocation2 + $0x30] sm:$0xff] %v267
      %vm428 = vcmask 523264
      %429 = vst.msk [vmem:[#allocation2 + $0x38] sm:$0xff] %vm428, %v268
      %430 = vst [vmem:[#allocation2 + $0x40] sm:$0xff] %v269
      %431 = vst [vmem:[#allocation2 + $0x48] sm:$0xff] %v270
      %432 = vst [vmem:[#allocation2 + $0x50] sm:$0xff] %v271
      %433 = vst [vmem:[#allocation2 + $0x58] sm:$0xff] %v272
      %434 = vst [vmem:[#allocation2 + $0x60] sm:$0xff] %v273
      %435 = vst [vmem:[#allocation2 + $0x68] sm:$0xff] %v274
      %436 = vst [vmem:[#allocation2 + $0x70] sm:$0xff] %v275
      %437 = vst.msk [vmem:[#allocation2 + $0x78] sm:$0xff] %vm428, %v276
      %438 = vst [vmem:[#allocation2 + $0x80] sm:$0xff] %v277
      %439 = vst [vmem:[#allocation2 + $0x88] sm:$0xff] %v278
      %440 = vst [vmem:[#allocation2 + $0x90] sm:$0xff] %v279
      %441 = vst [vmem:[#allocation2 + $0x98] sm:$0xff] %v280
      %442 = vst [vmem:[#allocation2 + $0xa0] sm:$0xff] %v281
      %443 = vst [vmem:[#allocation2 + $0xa8] sm:$0xff] %v282
      %444 = vst [vmem:[#allocation2 + $0xb0] sm:$0xff] %v283
      %445 = vst.msk [vmem:[#allocation2 + $0xb8] sm:$0xff] %vm428, %v284
      %446 = vst [vmem:[#allocation2 + $0xc0] sm:$0xff] %v285
      %447 = vst [vmem:[#allocation2 + $0xc8] sm:$0xff] %v286
      %448 = vst [vmem:[#allocation2 + $0xd0] sm:$0xff] %v287
      %449 = vst [vmem:[#allocation2 + $0xd8] sm:$0xff] %v288
      %450 = vst [vmem:[#allocation2 + $0xe0] sm:$0xff] %v289
      %451 = vst [vmem:[#allocation2 + $0xe8] sm:$0xff] %v290
      %452 = vst [vmem:[#allocation2 + $0xf0] sm:$0xff] %v291
      %453 = vst.msk [vmem:[#allocation2 + $0xf8] sm:$0xff] %vm428, %v292
      %454 = vst [vmem:[#allocation2 + $0x100] sm:$0xff] %v293
      %455 = vst [vmem:[#allocation2 + $0x108] sm:$0xff] %v294
      %456 = vst [vmem:[#allocation2 + $0x110] sm:$0xff] %v295
      %457 = vst [vmem:[#allocation2 + $0x118] sm:$0xff] %v296
      %458 = vst [vmem:[#allocation2 + $0x120] sm:$0xff] %v297
      %459 = vst [vmem:[#allocation2 + $0x128] sm:$0xff] %v298
      %460 = vst [vmem:[#allocation2 + $0x130] sm:$0xff] %v299
      %461 = vst.msk [vmem:[#allocation2 + $0x138] sm:$0xff] %vm428, %v300
      %462 = vst [vmem:[#allocation2 + $0x140] sm:$0xff] %v301
      %463 = vst [vmem:[#allocation2 + $0x148] sm:$0xff] %v302
      %464 = vst [vmem:[#allocation2 + $0x150] sm:$0xff] %v303
      %465 = vst [vmem:[#allocation2 + $0x158] sm:$0xff] %v304
      %466 = vst [vmem:[#allocation2 + $0x160] sm:$0xff] %v305
      %467 = vst [vmem:[#allocation2 + $0x168] sm:$0xff] %v306
      %468 = vst [vmem:[#allocation2 + $0x170] sm:$0xff] %v307
      %469 = vst.msk [vmem:[#allocation2 + $0x178] sm:$0xff] %vm428, %v308
      %470 = vst [vmem:[#allocation2 + $0x180] sm:$0xff] %v309
      %471 = vst [vmem:[#allocation2 + $0x188] sm:$0xff] %v310
      %472 = vst [vmem:[#allocation2 + $0x190] sm:$0xff] %v311
      %473 = vst [vmem:[#allocation2 + $0x198] sm:$0xff] %v312
      %474 = vst [vmem:[#allocation2 + $0x1a0] sm:$0xff] %v313
      %475 = vst [vmem:[#allocation2 + $0x1a8] sm:$0xff] %v314
      %476 = vst [vmem:[#allocation2 + $0x1b0] sm:$0xff] %v315
      %477 = vst.msk [vmem:[#allocation2 + $0x1b8] sm:$0xff] %vm428, %v316
      %478 = vst [vmem:[#allocation2 + $0x1c0] sm:$0xff] %v317
      %479 = vst [vmem:[#allocation2 + $0x1c8] sm:$0xff] %v318
      %480 = vst [vmem:[#allocation2 + $0x1d0] sm:$0xff] %v319
      %481 = vst [vmem:[#allocation2 + $0x1d8] sm:$0xff] %v320
      %482 = vst [vmem:[#allocation2 + $0x1e0] sm:$0xff] %v321
      %483 = vst [vmem:[#allocation2 + $0x1e8] sm:$0xff] %v322
      %484 = vst [vmem:[#allocation2 + $0x1f0] sm:$0xff] %v323
      %485 = vst.msk [vmem:[#allocation2 + $0x1f8] sm:$0xff] %vm428, %v324
      %486 = vst [vmem:[#allocation2 + $0x200] sm:$0xff] %v325
      %487 = vst [vmem:[#allocation2 + $0x208] sm:$0xff] %v326
      %488 = vst [vmem:[#allocation2 + $0x210] sm:$0xff] %v327
      %489 = vst [vmem:[#allocation2 + $0x218] sm:$0xff] %v328
      %490 = vst [vmem:[#allocation2 + $0x220] sm:$0xff] %v329
      %491 = vst [vmem:[#allocation2 + $0x228] sm:$0xff] %v330
      %492 = vst [vmem:[#allocation2 + $0x230] sm:$0xff] %v331
      %493 = vst.msk [vmem:[#allocation2 + $0x238] sm:$0xff] %vm428, %v332
      %494 = vst [vmem:[#allocation2 + $0x240] sm:$0xff] %v333
      %495 = vst [vmem:[#allocation2 + $0x248] sm:$0xff] %v334
      %496 = vst [vmem:[#allocation2 + $0x250] sm:$0xff] %v335
      %497 = vst [vmem:[#allocation2 + $0x258] sm:$0xff] %v336
      %498 = vst [vmem:[#allocation2 + $0x260] sm:$0xff] %v337
      %499 = vst [vmem:[#allocation2 + $0x268] sm:$0xff] %v338
      %500 = vst [vmem:[#allocation2 + $0x270] sm:$0xff] %v339
      %501 = vst.msk [vmem:[#allocation2 + $0x278] sm:$0xff] %vm428, %v340
      %502 = vst [vmem:[#allocation2 + $0x280] sm:$0xff] %v341
      %503 = vst [vmem:[#allocation2 + $0x288] sm:$0xff] %v342
      %504 = vst [vmem:[#allocation2 + $0x290] sm:$0xff] %v343
      %505 = vst [vmem:[#allocation2 + $0x298] sm:$0xff] %v344
      %506 = vst [vmem:[#allocation2 + $0x2a0] sm:$0xff] %v345
      %507 = vst [vmem:[#allocation2 + $0x2a8] sm:$0xff] %v346
      %508 = vst [vmem:[#allocation2 + $0x2b0] sm:$0xff] %v347
      %509 = vst.msk [vmem:[#allocation2 + $0x2b8] sm:$0xff] %vm428, %v348
      %510 = vst [vmem:[#allocation2 + $0x2c0] sm:$0xff] %v349
      %511 = vst [vmem:[#allocation2 + $0x2c8] sm:$0xff] %v350
      %512 = vst [vmem:[#allocation2 + $0x2d0] sm:$0xff] %v351
      %513 = vst [vmem:[#allocation2 + $0x2d8] sm:$0xff] %v352
      %514 = vst [vmem:[#allocation2 + $0x2e0] sm:$0xff] %v353
      %515 = vst [vmem:[#allocation2 + $0x2e8] sm:$0xff] %v354
      %516 = vst [vmem:[#allocation2 + $0x2f0] sm:$0xff] %v355
      %517 = vst.msk [vmem:[#allocation2 + $0x2f8] sm:$0xff] %vm428, %v356
      %518 = vst [vmem:[#allocation2 + $0x300] sm:$0xff] %v357
      %519 = vst [vmem:[#allocation2 + $0x308] sm:$0xff] %v358
      %520 = vst [vmem:[#allocation2 + $0x310] sm:$0xff] %v359
      %521 = vst [vmem:[#allocation2 + $0x318] sm:$0xff] %v360
      %522 = vst [vmem:[#allocation2 + $0x320] sm:$0xff] %v361
      %523 = vst [vmem:[#allocation2 + $0x328] sm:$0xff] %v362
      %524 = vst [vmem:[#allocation2 + $0x330] sm:$0xff] %v363
      %525 = vst.msk [vmem:[#allocation2 + $0x338] sm:$0xff] %vm428, %v364
      %526 = vst [vmem:[#allocation2 + $0x340] sm:$0xff] %v365
      %527 = vst [vmem:[#allocation2 + $0x348] sm:$0xff] %v366
      %528 = vst [vmem:[#allocation2 + $0x350] sm:$0xff] %v367
      %529 = vst [vmem:[#allocation2 + $0x358] sm:$0xff] %v368
      %530 = vst [vmem:[#allocation2 + $0x360] sm:$0xff] %v369
      %531 = vst [vmem:[#allocation2 + $0x368] sm:$0xff] %v370
      %532 = vst [vmem:[#allocation2 + $0x370] sm:$0xff] %v371
      %533 = vst.msk [vmem:[#allocation2 + $0x378] sm:$0xff] %vm428, %v372
      %534 = vst [vmem:[#allocation2 + $0x380] sm:$0xff] %v373
      %535 = vst [vmem:[#allocation2 + $0x388] sm:$0xff] %v374
      %536 = vst [vmem:[#allocation2 + $0x390] sm:$0xff] %v375
      %537 = vst [vmem:[#allocation2 + $0x398] sm:$0xff] %v376
      %538 = vst [vmem:[#allocation2 + $0x3a0] sm:$0xff] %v377
      %539 = vst [vmem:[#allocation2 + $0x3a8] sm:$0xff] %v378
      %540 = vst [vmem:[#allocation2 + $0x3b0] sm:$0xff] %v379
      %541 = vst.msk [vmem:[#allocation2 + $0x3b8] sm:$0xff] %vm428, %v380
      %542 = vst [vmem:[#allocation2 + $0x3c0] sm:$0xff] %v381
      %543 = vst [vmem:[#allocation2 + $0x3c8] sm:$0xff] %v382
      %544 = vst [vmem:[#allocation2 + $0x3d0] sm:$0xff] %v383
      %545 = vst [vmem:[#allocation2 + $0x3d8] sm:$0xff] %v384
      %546 = vst [vmem:[#allocation2 + $0x3e0] sm:$0xff] %v385
      %547 = vst [vmem:[#allocation2 + $0x3e8] sm:$0xff] %v386
      %548 = vst [vmem:[#allocation2 + $0x3f0] sm:$0xff] %v387
      %549 = vst.msk [vmem:[#allocation2 + $0x3f8] sm:$0xff] %vm428, %v388
      %550 = vst [vmem:[#allocation2 + $0x400] sm:$0xff] %v389
      %551 = vst [vmem:[#allocation2 + $0x408] sm:$0xff] %v390
      %552 = vst [vmem:[#allocation2 + $0x410] sm:$0xff] %v391
      %553 = vst [vmem:[#allocation2 + $0x418] sm:$0xff] %v392
      %554 = vst [vmem:[#allocation2 + $0x420] sm:$0xff] %v393
      %555 = vst [vmem:[#allocation2 + $0x428] sm:$0xff] %v394
      %556 = vst [vmem:[#allocation2 + $0x430] sm:$0xff] %v395
      %557 = vst.msk [vmem:[#allocation2 + $0x438] sm:$0xff] %vm428, %v396
      %558 = vst [vmem:[#allocation2 + $0x440] sm:$0xff] %v397
      %559 = vst [vmem:[#allocation2 + $0x448] sm:$0xff] %v398
      %560 = vst [vmem:[#allocation2 + $0x450] sm:$0xff] %v399
      %561 = vst [vmem:[#allocation2 + $0x458] sm:$0xff] %v400
      %562 = vst [vmem:[#allocation2 + $0x460] sm:$0xff] %v401
      %563 = vst [vmem:[#allocation2 + $0x468] sm:$0xff] %v402
      %564 = vst [vmem:[#allocation2 + $0x470] sm:$0xff] %v403
      %565 = vst.msk [vmem:[#allocation2 + $0x478] sm:$0xff] %vm428, %v404
      %566 = vst [vmem:[#allocation2 + $0x480] sm:$0xff] %v405
      %567 = vst [vmem:[#allocation2 + $0x488] sm:$0xff] %v406
      %568 = vst [vmem:[#allocation2 + $0x490] sm:$0xff] %v407
      %569 = vst [vmem:[#allocation2 + $0x498] sm:$0xff] %v408
      %570 = vst [vmem:[#allocation2 + $0x4a0] sm:$0xff] %v409
      %571 = vst [vmem:[#allocation2 + $0x4a8] sm:$0xff] %v410
      %572 = vst [vmem:[#allocation2 + $0x4b0] sm:$0xff] %v411
      %573 = vst.msk [vmem:[#allocation2 + $0x4b8] sm:$0xff] %vm428, %v412
      %574 = vst [vmem:[#allocation2 + $0x4c0] sm:$0xff] %v413
      %575 = vst [vmem:[#allocation2 + $0x4c8] sm:$0xff] %v414
      %576 = vst [vmem:[#allocation2 + $0x4d0] sm:$0xff] %v415
      %577 = vst [vmem:[#allocation2 + $0x4d8] sm:$0xff] %v416
      %578 = vst [vmem:[#allocation2 + $0x4e0] sm:$0xff] %v417
      %579 = vst [vmem:[#allocation2 + $0x4e8] sm:$0xff] %v418
      %580 = vst [vmem:[#allocation2 + $0x4f0] sm:$0xff] %v419
      %581 = vst.msk [vmem:[#allocation2 + $0x4f8] sm:$0xff] %vm428, %v420
    $region29: #{tpu_custom_call.1} parent=1 // pred_fallthru
      _
    %v582 = vld [vmem:[#allocation2] sm:$0xff]
    %v583 = vld [vmem:[#allocation2 + $0x8] sm:$0xff]
    %v584 = vld [vmem:[#allocation2 + $0x10] sm:$0xff]
    %v585 = vld [vmem:[#allocation2 + $0x18] sm:$0xff]
    %v586 = vld [vmem:[#allocation2 + $0x20] sm:$0xff]
    %v587 = vld [vmem:[#allocation2 + $0x28] sm:$0xff]
    %v588 = vld [vmem:[#allocation2 + $0x30] sm:$0xff]
    %v589 = vld [vmem:[#allocation2 + $0x38] sm:$0xff]
    %v590 = vld [vmem:[#allocation2 + $0x40] sm:$0xff]
    %v591 = vld [vmem:[#allocation2 + $0x48] sm:$0xff]
    %v592 = vld [vmem:[#allocation2 + $0x50] sm:$0xff]
    %v593 = vld [vmem:[#allocation2 + $0x58] sm:$0xff]
    %v594 = vld [vmem:[#allocation2 + $0x60] sm:$0xff]
    %v595 = vld [vmem:[#allocation2 + $0x68] sm:$0xff]
    %v596 = vld [vmem:[#allocation2 + $0x70] sm:$0xff]
    %v597 = vld [vmem:[#allocation2 + $0x78] sm:$0xff]
    %v598 = vld [vmem:[#allocation2 + $0x80] sm:$0xff]
    %v599 = vld [vmem:[#allocation2 + $0x88] sm:$0xff]
    %v600 = vld [vmem:[#allocation2 + $0x90] sm:$0xff]
    %v601 = vld [vmem:[#allocation2 + $0x98] sm:$0xff]
    %v602 = vld [vmem:[#allocation2 + $0xa0] sm:$0xff]
    %v603 = vld [vmem:[#allocation2 + $0xa8] sm:$0xff]
    %v604 = vld [vmem:[#allocation2 + $0xb0] sm:$0xff]
    %v605 = vld [vmem:[#allocation2 + $0xb8] sm:$0xff]
    %v606 = vld [vmem:[#allocation2 + $0xc0] sm:$0xff]
    %v607 = vld [vmem:[#allocation2 + $0xc8] sm:$0xff]
    %v608 = vld [vmem:[#allocation2 + $0xd0] sm:$0xff]
    %v609 = vld [vmem:[#allocation2 + $0xd8] sm:$0xff]
    %v610 = vld [vmem:[#allocation2 + $0xe0] sm:$0xff]
    %v611 = vld [vmem:[#allocation2 + $0xe8] sm:$0xff]
    %v612 = vld [vmem:[#allocation2 + $0xf0] sm:$0xff]
    %v613 = vld [vmem:[#allocation2 + $0xf8] sm:$0xff]
    %v614 = vld [vmem:[#allocation2 + $0x100] sm:$0xff]
    %v615 = vld [vmem:[#allocation2 + $0x108] sm:$0xff]
    %v616 = vld [vmem:[#allocation2 + $0x110] sm:$0xff]
    %v617 = vld [vmem:[#allocation2 + $0x118] sm:$0xff]
    %v618 = vld [vmem:[#allocation2 + $0x120] sm:$0xff]
    %v619 = vld [vmem:[#allocation2 + $0x128] sm:$0xff]
    %v620 = vld [vmem:[#allocation2 + $0x130] sm:$0xff]
    %v621 = vld [vmem:[#allocation2 + $0x138] sm:$0xff]
    %v622 = vld [vmem:[#allocation2 + $0x140] sm:$0xff]
    %v623 = vld [vmem:[#allocation2 + $0x148] sm:$0xff]
    %v624 = vld [vmem:[#allocation2 + $0x150] sm:$0xff]
    %v625 = vld [vmem:[#allocation2 + $0x158] sm:$0xff]
    %v626 = vld [vmem:[#allocation2 + $0x160] sm:$0xff]
    %v627 = vld [vmem:[#allocation2 + $0x168] sm:$0xff]
    %v628 = vld [vmem:[#allocation2 + $0x170] sm:$0xff]
    %v629 = vld [vmem:[#allocation2 + $0x178] sm:$0xff]
    %v630 = vld [vmem:[#allocation2 + $0x180] sm:$0xff]
    %v631 = vld [vmem:[#allocation2 + $0x188] sm:$0xff]
    %v632 = vld [vmem:[#allocation2 + $0x190] sm:$0xff]
    %v633 = vld [vmem:[#allocation2 + $0x198] sm:$0xff]
    %v634 = vld [vmem:[#allocation2 + $0x1a0] sm:$0xff]
    %v635 = vld [vmem:[#allocation2 + $0x1a8] sm:$0xff]
    %v636 = vld [vmem:[#allocation2 + $0x1b0] sm:$0xff]
    %v637 = vld [vmem:[#allocation2 + $0x1b8] sm:$0xff]
    %v638 = vld [vmem:[#allocation2 + $0x1c0] sm:$0xff]
    %v639 = vld [vmem:[#allocation2 + $0x1c8] sm:$0xff]
    %v640 = vld [vmem:[#allocation2 + $0x1d0] sm:$0xff]
    %v641 = vld [vmem:[#allocation2 + $0x1d8] sm:$0xff]
    %v642 = vld [vmem:[#allocation2 + $0x1e0] sm:$0xff]
    %v643 = vld [vmem:[#allocation2 + $0x1e8] sm:$0xff]
    %v644 = vld [vmem:[#allocation2 + $0x1f0] sm:$0xff]
    %v645 = vld [vmem:[#allocation2 + $0x1f8] sm:$0xff]
    %v646 = vld [vmem:[#allocation2 + $0x200] sm:$0xff]
    %v647 = vld [vmem:[#allocation2 + $0x208] sm:$0xff]
    %v648 = vld [vmem:[#allocation2 + $0x210] sm:$0xff]
    %v649 = vld [vmem:[#allocation2 + $0x218] sm:$0xff]
    %v650 = vld [vmem:[#allocation2 + $0x220] sm:$0xff]
    %v651 = vld [vmem:[#allocation2 + $0x228] sm:$0xff]
    %v652 = vld [vmem:[#allocation2 + $0x230] sm:$0xff]
    %v653 = vld [vmem:[#allocation2 + $0x238] sm:$0xff]
    %v654 = vld [vmem:[#allocation2 + $0x240] sm:$0xff]
    %v655 = vld [vmem:[#allocation2 + $0x248] sm:$0xff]
    %v656 = vld [vmem:[#allocation2 + $0x250] sm:$0xff]
    %v657 = vld [vmem:[#allocation2 + $0x258] sm:$0xff]
    %v658 = vld [vmem:[#allocation2 + $0x260] sm:$0xff]
    %v659 = vld [vmem:[#allocation2 + $0x268] sm:$0xff]
    %v660 = vld [vmem:[#allocation2 + $0x270] sm:$0xff]
    %v661 = vld [vmem:[#allocation2 + $0x278] sm:$0xff]
    %v662 = vld [vmem:[#allocation2 + $0x280] sm:$0xff]
    %v663 = vld [vmem:[#allocation2 + $0x288] sm:$0xff]
    %v664 = vld [vmem:[#allocation2 + $0x290] sm:$0xff]
    %v665 = vld [vmem:[#allocation2 + $0x298] sm:$0xff]
    %v666 = vld [vmem:[#allocation2 + $0x2a0] sm:$0xff]
    %v667 = vld [vmem:[#allocation2 + $0x2a8] sm:$0xff]
    %v668 = vld [vmem:[#allocation2 + $0x2b0] sm:$0xff]
    %v669 = vld [vmem:[#allocation2 + $0x2b8] sm:$0xff]
    %v670 = vld [vmem:[#allocation2 + $0x2c0] sm:$0xff]
    %v671 = vld [vmem:[#allocation2 + $0x2c8] sm:$0xff]
    %v672 = vld [vmem:[#allocation2 + $0x2d0] sm:$0xff]
    %v673 = vld [vmem:[#allocation2 + $0x2d8] sm:$0xff]
    %v674 = vld [vmem:[#allocation2 + $0x2e0] sm:$0xff]
    %v675 = vld [vmem:[#allocation2 + $0x2e8] sm:$0xff]
    %v676 = vld [vmem:[#allocation2 + $0x2f0] sm:$0xff]
    %v677 = vld [vmem:[#allocation2 + $0x2f8] sm:$0xff]
    %v678 = vld [vmem:[#allocation2 + $0x300] sm:$0xff]
    %v679 = vld [vmem:[#allocation2 + $0x308] sm:$0xff]
    %v680 = vld [vmem:[#allocation2 + $0x310] sm:$0xff]
    %v681 = vld [vmem:[#allocation2 + $0x318] sm:$0xff]
    %v682 = vld [vmem:[#allocation2 + $0x320] sm:$0xff]
    %v683 = vld [vmem:[#allocation2 + $0x328] sm:$0xff]
    %v684 = vld [vmem:[#allocation2 + $0x330] sm:$0xff]
    %v685 = vld [vmem:[#allocation2 + $0x338] sm:$0xff]
    %v686 = vld [vmem:[#allocation2 + $0x340] sm:$0xff]
    %v687 = vld [vmem:[#allocation2 + $0x348] sm:$0xff]
    %v688 = vld [vmem:[#allocation2 + $0x350] sm:$0xff]
    %v689 = vld [vmem:[#allocation2 + $0x358] sm:$0xff]
    %v690 = vld [vmem:[#allocation2 + $0x360] sm:$0xff]
    %v691 = vld [vmem:[#allocation2 + $0x368] sm:$0xff]
    %v692 = vld [vmem:[#allocation2 + $0x370] sm:$0xff]
    %v693 = vld [vmem:[#allocation2 + $0x378] sm:$0xff]
    %v694 = vld [vmem:[#allocation2 + $0x380] sm:$0xff]
    %v695 = vld [vmem:[#allocation2 + $0x388] sm:$0xff]
    %v696 = vld [vmem:[#allocation2 + $0x390] sm:$0xff]
    %v697 = vld [vmem:[#allocation2 + $0x398] sm:$0xff]
    %v698 = vld [vmem:[#allocation2 + $0x3a0] sm:$0xff]
    %v699 = vld [vmem:[#allocation2 + $0x3a8] sm:$0xff]
    %v700 = vld [vmem:[#allocation2 + $0x3b0] sm:$0xff]
    %v701 = vld [vmem:[#allocation2 + $0x3b8] sm:$0xff]
    %v702 = vld [vmem:[#allocation2 + $0x3c0] sm:$0xff]
    %v703 = vld [vmem:[#allocation2 + $0x3c8] sm:$0xff]
    %v704 = vld [vmem:[#allocation2 + $0x3d0] sm:$0xff]
    %v705 = vld [vmem:[#allocation2 + $0x3d8] sm:$0xff]
    %v706 = vld [vmem:[#allocation2 + $0x3e0] sm:$0xff]
    %v707 = vld [vmem:[#allocation2 + $0x3e8] sm:$0xff]
    %v708 = vld [vmem:[#allocation2 + $0x3f0] sm:$0xff]
    %v709 = vld [vmem:[#allocation2 + $0x3f8] sm:$0xff]
    %v710 = vld [vmem:[#allocation2 + $0x400] sm:$0xff]
    %v711 = vld [vmem:[#allocation2 + $0x408] sm:$0xff]
    %v712 = vld [vmem:[#allocation2 + $0x410] sm:$0xff]
    %v713 = vld [vmem:[#allocation2 + $0x418] sm:$0xff]
    %v714 = vld [vmem:[#allocation2 + $0x420] sm:$0xff]
    %v715 = vld [vmem:[#allocation2 + $0x428] sm:$0xff]
    %v716 = vld [vmem:[#allocation2 + $0x430] sm:$0xff]
    %v717 = vld [vmem:[#allocation2 + $0x438] sm:$0xff]
    %v718 = vld [vmem:[#allocation2 + $0x440] sm:$0xff]
    %v719 = vld [vmem:[#allocation2 + $0x448] sm:$0xff]
    %v720 = vld [vmem:[#allocation2 + $0x450] sm:$0xff]
    %v721 = vld [vmem:[#allocation2 + $0x458] sm:$0xff]
    %v722 = vld [vmem:[#allocation2 + $0x460] sm:$0xff]
    %v723 = vld [vmem:[#allocation2 + $0x468] sm:$0xff]
    %v724 = vld [vmem:[#allocation2 + $0x470] sm:$0xff]
    %v725 = vld [vmem:[#allocation2 + $0x478] sm:$0xff]
    %v726 = vld [vmem:[#allocation2 + $0x480] sm:$0xff]
    %v727 = vld [vmem:[#allocation2 + $0x488] sm:$0xff]
    %v728 = vld [vmem:[#allocation2 + $0x490] sm:$0xff]
    %v729 = vld [vmem:[#allocation2 + $0x498] sm:$0xff]
    %v730 = vld [vmem:[#allocation2 + $0x4a0] sm:$0xff]
    %v731 = vld [vmem:[#allocation2 + $0x4a8] sm:$0xff]
    %v732 = vld [vmem:[#allocation2 + $0x4b0] sm:$0xff]
    %v733 = vld [vmem:[#allocation2 + $0x4b8] sm:$0xff]
    %v734 = vld [vmem:[#allocation2 + $0x4c0] sm:$0xff]
    %v735 = vld [vmem:[#allocation2 + $0x4c8] sm:$0xff]
    %v736 = vld [vmem:[#allocation2 + $0x4d0] sm:$0xff]
    %v737 = vld [vmem:[#allocation2 + $0x4d8] sm:$0xff]
    %v738 = vld [vmem:[#allocation2 + $0x4e0] sm:$0xff]
    %v739 = vld [vmem:[#allocation2 + $0x4e8] sm:$0xff]
    %v740 = vld [vmem:[#allocation2 + $0x4f0] sm:$0xff]
    %v741 = vld [vmem:[#allocation2 + $0x4f8] sm:$0xff]
    %v742 = vld [vmem:[#allocation8] sm:$0xff]
    %v743 = vld [vmem:[#allocation8 + $0x8] sm:$0xff]
    %v744 = vld [vmem:[#allocation8 + $0x10] sm:$0xff]
    %v745 = vld [vmem:[#allocation8 + $0x18] sm:$0xff]
    %v746 = vld [vmem:[#allocation8 + $0x20] sm:$0xff]
    %v747 = vld [vmem:[#allocation8 + $0x28] sm:$0xff]
    %v748 = vld [vmem:[#allocation8 + $0x30] sm:$0xff]
    %v749 = vld [vmem:[#allocation8 + $0x38] sm:$0xff]
    %v750 = vld [vmem:[#allocation8 + $0x40] sm:$0xff]
    %v751 = vld [vmem:[#allocation8 + $0x48] sm:$0xff]
    %v752 = vld [vmem:[#allocation8 + $0x50] sm:$0xff]
    %v753 = vld [vmem:[#allocation8 + $0x58] sm:$0xff]
    %v754 = vld [vmem:[#allocation8 + $0x60] sm:$0xff]
    %v755 = vld [vmem:[#allocation8 + $0x68] sm:$0xff]
    %v756 = vld [vmem:[#allocation8 + $0x70] sm:$0xff]
    %v757 = vld [vmem:[#allocation8 + $0x78] sm:$0xff]
    %v758 = vld [vmem:[#allocation8 + $0x80] sm:$0xff]
    %v759 = vld [vmem:[#allocation8 + $0x88] sm:$0xff]
    %v760 = vld [vmem:[#allocation8 + $0x90] sm:$0xff]
    %v761 = vld [vmem:[#allocation8 + $0x98] sm:$0xff]
    %v762 = vld [vmem:[#allocation8 + $0xa0] sm:$0xff]
    %v763 = vld [vmem:[#allocation8 + $0xa8] sm:$0xff]
    %v764 = vld [vmem:[#allocation8 + $0xb0] sm:$0xff]
    %v765 = vld [vmem:[#allocation8 + $0xb8] sm:$0xff]
    %v766 = vld [vmem:[#allocation8 + $0xc0] sm:$0xff]
    %v767 = vld [vmem:[#allocation8 + $0xc8] sm:$0xff]
    %v768 = vld [vmem:[#allocation8 + $0xd0] sm:$0xff]
    %v769 = vld [vmem:[#allocation8 + $0xd8] sm:$0xff]
    %v770 = vld [vmem:[#allocation8 + $0xe0] sm:$0xff]
    %v771 = vld [vmem:[#allocation8 + $0xe8] sm:$0xff]
    %v772 = vld [vmem:[#allocation8 + $0xf0] sm:$0xff]
    %v773 = vld [vmem:[#allocation8 + $0xf8] sm:$0xff]
    %v774 = vld [vmem:[#allocation8 + $0x100] sm:$0xff]
    %v775 = vld [vmem:[#allocation8 + $0x108] sm:$0xff]
    %v776 = vld [vmem:[#allocation8 + $0x110] sm:$0xff]
    %v777 = vld [vmem:[#allocation8 + $0x118] sm:$0xff]
    %v778 = vld [vmem:[#allocation8 + $0x120] sm:$0xff]
    %v779 = vld [vmem:[#allocation8 + $0x128] sm:$0xff]
    %v780 = vld [vmem:[#allocation8 + $0x130] sm:$0xff]
    %v781 = vld [vmem:[#allocation8 + $0x138] sm:$0xff]
    %v782 = vld [vmem:[#allocation8 + $0x140] sm:$0xff]
    %v783 = vld [vmem:[#allocation8 + $0x148] sm:$0xff]
    %v784 = vld [vmem:[#allocation8 + $0x150] sm:$0xff]
    %v785 = vld [vmem:[#allocation8 + $0x158] sm:$0xff]
    %v786 = vld [vmem:[#allocation8 + $0x160] sm:$0xff]
    %v787 = vld [vmem:[#allocation8 + $0x168] sm:$0xff]
    %v788 = vld [vmem:[#allocation8 + $0x170] sm:$0xff]
    %v789 = vld [vmem:[#allocation8 + $0x178] sm:$0xff]
    %v790 = vld [vmem:[#allocation8 + $0x180] sm:$0xff]
    %v791 = vld [vmem:[#allocation8 + $0x188] sm:$0xff]
    %v792 = vld [vmem:[#allocation8 + $0x190] sm:$0xff]
    %v793 = vld [vmem:[#allocation8 + $0x198] sm:$0xff]
    %v794 = vld [vmem:[#allocation8 + $0x1a0] sm:$0xff]
    %v795 = vld [vmem:[#allocation8 + $0x1a8] sm:$0xff]
    %v796 = vld [vmem:[#allocation8 + $0x1b0] sm:$0xff]
    %v797 = vld [vmem:[#allocation8 + $0x1b8] sm:$0xff]
    %v798 = vld [vmem:[#allocation8 + $0x1c0] sm:$0xff]
    %v799 = vld [vmem:[#allocation8 + $0x1c8] sm:$0xff]
    %v800 = vld [vmem:[#allocation8 + $0x1d0] sm:$0xff]
    %v801 = vld [vmem:[#allocation8 + $0x1d8] sm:$0xff]
    %v802 = vld [vmem:[#allocation8 + $0x1e0] sm:$0xff]
    %v803 = vld [vmem:[#allocation8 + $0x1e8] sm:$0xff]
    %v804 = vld [vmem:[#allocation8 + $0x1f0] sm:$0xff]
    %v805 = vld [vmem:[#allocation8 + $0x1f8] sm:$0xff]
    %v806 = vld [vmem:[#allocation8 + $0x200] sm:$0xff]
    %v807 = vld [vmem:[#allocation8 + $0x208] sm:$0xff]
    %v808 = vld [vmem:[#allocation8 + $0x210] sm:$0xff]
    %v809 = vld [vmem:[#allocation8 + $0x218] sm:$0xff]
    %v810 = vld [vmem:[#allocation8 + $0x220] sm:$0xff]
    %v811 = vld [vmem:[#allocation8 + $0x228] sm:$0xff]
    %v812 = vld [vmem:[#allocation8 + $0x230] sm:$0xff]
    %v813 = vld [vmem:[#allocation8 + $0x238] sm:$0xff]
    %v814 = vld [vmem:[#allocation8 + $0x240] sm:$0xff]
    %v815 = vld [vmem:[#allocation8 + $0x248] sm:$0xff]
    %v816 = vld [vmem:[#allocation8 + $0x250] sm:$0xff]
    %v817 = vld [vmem:[#allocation8 + $0x258] sm:$0xff]
    %v818 = vld [vmem:[#allocation8 + $0x260] sm:$0xff]
    %v819 = vld [vmem:[#allocation8 + $0x268] sm:$0xff]
    %v820 = vld [vmem:[#allocation8 + $0x270] sm:$0xff]
    %v821 = vld [vmem:[#allocation8 + $0x278] sm:$0xff]
    %v822 = vld [vmem:[#allocation8 + $0x280] sm:$0xff]
    %v823 = vld [vmem:[#allocation8 + $0x288] sm:$0xff]
    %v824 = vld [vmem:[#allocation8 + $0x290] sm:$0xff]
    %v825 = vld [vmem:[#allocation8 + $0x298] sm:$0xff]
    %v826 = vld [vmem:[#allocation8 + $0x2a0] sm:$0xff]
    %v827 = vld [vmem:[#allocation8 + $0x2a8] sm:$0xff]
    %v828 = vld [vmem:[#allocation8 + $0x2b0] sm:$0xff]
    %v829 = vld [vmem:[#allocation8 + $0x2b8] sm:$0xff]
    %v830 = vld [vmem:[#allocation8 + $0x2c0] sm:$0xff]
    %v831 = vld [vmem:[#allocation8 + $0x2c8] sm:$0xff]
    %v832 = vld [vmem:[#allocation8 + $0x2d0] sm:$0xff]
    %v833 = vld [vmem:[#allocation8 + $0x2d8] sm:$0xff]
    %v834 = vld [vmem:[#allocation8 + $0x2e0] sm:$0xff]
    %v835 = vld [vmem:[#allocation8 + $0x2e8] sm:$0xff]
    %v836 = vld [vmem:[#allocation8 + $0x2f0] sm:$0xff]
    %v837 = vld [vmem:[#allocation8 + $0x2f8] sm:$0xff]
    %v838 = vld [vmem:[#allocation8 + $0x300] sm:$0xff]
    %v839 = vld [vmem:[#allocation8 + $0x308] sm:$0xff]
    %v840 = vld [vmem:[#allocation8 + $0x310] sm:$0xff]
    %v841 = vld [vmem:[#allocation8 + $0x318] sm:$0xff]
    %v842 = vld [vmem:[#allocation8 + $0x320] sm:$0xff]
    %v843 = vld [vmem:[#allocation8 + $0x328] sm:$0xff]
    %v844 = vld [vmem:[#allocation8 + $0x330] sm:$0xff]
    %v845 = vld [vmem:[#allocation8 + $0x338] sm:$0xff]
    %v846 = vld [vmem:[#allocation8 + $0x340] sm:$0xff]
    %v847 = vld [vmem:[#allocation8 + $0x348] sm:$0xff]
    %v848 = vld [vmem:[#allocation8 + $0x350] sm:$0xff]
    %v849 = vld [vmem:[#allocation8 + $0x358] sm:$0xff]
    %v850 = vld [vmem:[#allocation8 + $0x360] sm:$0xff]
    %v851 = vld [vmem:[#allocation8 + $0x368] sm:$0xff]
    %v852 = vld [vmem:[#allocation8 + $0x370] sm:$0xff]
    %v853 = vld [vmem:[#allocation8 + $0x378] sm:$0xff]
    %v854 = vld [vmem:[#allocation8 + $0x380] sm:$0xff]
    %v855 = vld [vmem:[#allocation8 + $0x388] sm:$0xff]
    %v856 = vld [vmem:[#allocation8 + $0x390] sm:$0xff]
    %v857 = vld [vmem:[#allocation8 + $0x398] sm:$0xff]
    %v858 = vld [vmem:[#allocation8 + $0x3a0] sm:$0xff]
    %v859 = vld [vmem:[#allocation8 + $0x3a8] sm:$0xff]
    %v860 = vld [vmem:[#allocation8 + $0x3b0] sm:$0xff]
    %v861 = vld [vmem:[#allocation8 + $0x3b8] sm:$0xff]
    %v862 = vld [vmem:[#allocation8 + $0x3c0] sm:$0xff]
    %v863 = vld [vmem:[#allocation8 + $0x3c8] sm:$0xff]
    %v864 = vld [vmem:[#allocation8 + $0x3d0] sm:$0xff]
    %v865 = vld [vmem:[#allocation8 + $0x3d8] sm:$0xff]
    %v866 = vld [vmem:[#allocation8 + $0x3e0] sm:$0xff]
    %v867 = vld [vmem:[#allocation8 + $0x3e8] sm:$0xff]
    %v868 = vld [vmem:[#allocation8 + $0x3f0] sm:$0xff]
    %v869 = vld [vmem:[#allocation8 + $0x3f8] sm:$0xff]
    %v870 = vld [vmem:[#allocation8 + $0x400] sm:$0xff]
    %v871 = vld [vmem:[#allocation8 + $0x408] sm:$0xff]
    %v872 = vld [vmem:[#allocation8 + $0x410] sm:$0xff]
    %v873 = vld [vmem:[#allocation8 + $0x418] sm:$0xff]
    %v874 = vld [vmem:[#allocation8 + $0x420] sm:$0xff]
    %v875 = vld [vmem:[#allocation8 + $0x428] sm:$0xff]
    %v876 = vld [vmem:[#allocation8 + $0x430] sm:$0xff]
    %v877 = vld [vmem:[#allocation8 + $0x438] sm:$0xff]
    %v878 = vld [vmem:[#allocation8 + $0x440] sm:$0xff]
    %v879 = vld [vmem:[#allocation8 + $0x448] sm:$0xff]
    %v880 = vld [vmem:[#allocation8 + $0x450] sm:$0xff]
    %v881 = vld [vmem:[#allocation8 + $0x458] sm:$0xff]
    %v882 = vld [vmem:[#allocation8 + $0x460] sm:$0xff]
    %v883 = vld [vmem:[#allocation8 + $0x468] sm:$0xff]
    %v884 = vld [vmem:[#allocation8 + $0x470] sm:$0xff]
    %v885 = vld [vmem:[#allocation8 + $0x478] sm:$0xff]
    %v886 = vld [vmem:[#allocation8 + $0x480] sm:$0xff]
    %v887 = vld [vmem:[#allocation8 + $0x488] sm:$0xff]
    %v888 = vld [vmem:[#allocation8 + $0x490] sm:$0xff]
    %v889 = vld [vmem:[#allocation8 + $0x498] sm:$0xff]
    %v890 = vld [vmem:[#allocation8 + $0x4a0] sm:$0xff]
    %v891 = vld [vmem:[#allocation8 + $0x4a8] sm:$0xff]
    %v892 = vld [vmem:[#allocation8 + $0x4b0] sm:$0xff]
    %v893 = vld [vmem:[#allocation8 + $0x4b8] sm:$0xff]
    %v894 = vld [vmem:[#allocation8 + $0x4c0] sm:$0xff]
    %v895 = vld [vmem:[#allocation8 + $0x4c8] sm:$0xff]
    %v896 = vld [vmem:[#allocation8 + $0x4d0] sm:$0xff]
    %v897 = vld [vmem:[#allocation8 + $0x4d8] sm:$0xff]
    %v898 = vld [vmem:[#allocation8 + $0x4e0] sm:$0xff]
    %v899 = vld [vmem:[#allocation8 + $0x4e8] sm:$0xff]
    %v900 = vld [vmem:[#allocation8 + $0x4f0] sm:$0xff]
    %v901 = vld [vmem:[#allocation8 + $0x4f8] sm:$0xff]
    %v902 = vld [vmem:[#allocation8 + $0x500] sm:$0xff]
    %v903 = vld [vmem:[#allocation8 + $0x508] sm:$0xff]
    %v904 = vld [vmem:[#allocation8 + $0x510] sm:$0xff]
    %v905 = vld [vmem:[#allocation8 + $0x518] sm:$0xff]
    %v906 = vld [vmem:[#allocation8 + $0x520] sm:$0xff]
    %v907 = vld [vmem:[#allocation8 + $0x528] sm:$0xff]
    %v908 = vld [vmem:[#allocation8 + $0x530] sm:$0xff]
    %v909 = vld [vmem:[#allocation8 + $0x538] sm:$0xff]
    %v910 = vld [vmem:[#allocation8 + $0x540] sm:$0xff]
    %v911 = vld [vmem:[#allocation8 + $0x548] sm:$0xff]
    %v912 = vld [vmem:[#allocation8 + $0x550] sm:$0xff]
    %v913 = vld [vmem:[#allocation8 + $0x558] sm:$0xff]
    %v914 = vld [vmem:[#allocation8 + $0x560] sm:$0xff]
    %v915 = vld [vmem:[#allocation8 + $0x568] sm:$0xff]
    %v916 = vld [vmem:[#allocation8 + $0x570] sm:$0xff]
    %v917 = vld [vmem:[#allocation8 + $0x578] sm:$0xff]
    %v918 = vld [vmem:[#allocation8 + $0x580] sm:$0xff]
    %v919 = vld [vmem:[#allocation8 + $0x588] sm:$0xff]
    %v920 = vld [vmem:[#allocation8 + $0x590] sm:$0xff]
    %v921 = vld [vmem:[#allocation8 + $0x598] sm:$0xff]
    %v922 = vld [vmem:[#allocation8 + $0x5a0] sm:$0xff]
    %v923 = vld [vmem:[#allocation8 + $0x5a8] sm:$0xff]
    %v924 = vld [vmem:[#allocation8 + $0x5b0] sm:$0xff]
    %v925 = vld [vmem:[#allocation8 + $0x5b8] sm:$0xff]
    %v926 = vld [vmem:[#allocation8 + $0x5c0] sm:$0xff]
    %v927 = vld [vmem:[#allocation8 + $0x5c8] sm:$0xff]
    %v928 = vld [vmem:[#allocation8 + $0x5d0] sm:$0xff]
    %v929 = vld [vmem:[#allocation8 + $0x5d8] sm:$0xff]
    %v930 = vld [vmem:[#allocation8 + $0x5e0] sm:$0xff]
    %v931 = vld [vmem:[#allocation8 + $0x5e8] sm:$0xff]
    %v932 = vld [vmem:[#allocation8 + $0x5f0] sm:$0xff]
    %v933 = vld [vmem:[#allocation8 + $0x5f8] sm:$0xff]
    %v934 = vld [vmem:[#allocation8 + $0x600] sm:$0xff]
    %v935 = vld [vmem:[#allocation8 + $0x608] sm:$0xff]
    %v936 = vld [vmem:[#allocation8 + $0x610] sm:$0xff]
    %v937 = vld [vmem:[#allocation8 + $0x618] sm:$0xff]
    %v938 = vld [vmem:[#allocation8 + $0x620] sm:$0xff]
    %v939 = vld [vmem:[#allocation8 + $0x628] sm:$0xff]
    %v940 = vld [vmem:[#allocation8 + $0x630] sm:$0xff]
    %v941 = vld [vmem:[#allocation8 + $0x638] sm:$0xff]
    %v942 = vld [vmem:[#allocation8 + $0x640] sm:$0xff]
    %v943 = vld [vmem:[#allocation8 + $0x648] sm:$0xff]
    %v944 = vld [vmem:[#allocation8 + $0x650] sm:$0xff]
    %v945 = vld [vmem:[#allocation8 + $0x658] sm:$0xff]
    %v946 = vld [vmem:[#allocation8 + $0x660] sm:$0xff]
    %v947 = vld [vmem:[#allocation8 + $0x668] sm:$0xff]
    %v948 = vld [vmem:[#allocation8 + $0x670] sm:$0xff]
    %v949 = vld [vmem:[#allocation8 + $0x678] sm:$0xff]
    %v950 = vld [vmem:[#allocation8 + $0x680] sm:$0xff]
    %v951 = vld [vmem:[#allocation8 + $0x688] sm:$0xff]
    %v952 = vld [vmem:[#allocation8 + $0x690] sm:$0xff]
    %v953 = vld [vmem:[#allocation8 + $0x698] sm:$0xff]
    %v954 = vld [vmem:[#allocation8 + $0x6a0] sm:$0xff]
    %v955 = vld [vmem:[#allocation8 + $0x6a8] sm:$0xff]
    %v956 = vld [vmem:[#allocation8 + $0x6b0] sm:$0xff]
    %v957 = vld [vmem:[#allocation8 + $0x6b8] sm:$0xff]
    %v958 = vld [vmem:[#allocation8 + $0x6c0] sm:$0xff]
    %v959 = vld [vmem:[#allocation8 + $0x6c8] sm:$0xff]
    %v960 = vld [vmem:[#allocation8 + $0x6d0] sm:$0xff]
    %v961 = vld [vmem:[#allocation8 + $0x6d8] sm:$0xff]
    %v962 = vld [vmem:[#allocation8 + $0x6e0] sm:$0xff]
    %v963 = vld [vmem:[#allocation8 + $0x6e8] sm:$0xff]
    %v964 = vld [vmem:[#allocation8 + $0x6f0] sm:$0xff]
    %v965 = vld [vmem:[#allocation8 + $0x6f8] sm:$0xff]
    %v966 = vld [vmem:[#allocation8 + $0x700] sm:$0xff]
    %v967 = vld [vmem:[#allocation8 + $0x708] sm:$0xff]
    %v968 = vld [vmem:[#allocation8 + $0x710] sm:$0xff]
    %v969 = vld [vmem:[#allocation8 + $0x718] sm:$0xff]
    %v970 = vld [vmem:[#allocation8 + $0x720] sm:$0xff]
    %v971 = vld [vmem:[#allocation8 + $0x728] sm:$0xff]
    %v972 = vld [vmem:[#allocation8 + $0x730] sm:$0xff]
    %v973 = vld [vmem:[#allocation8 + $0x738] sm:$0xff]
    %v974 = vld [vmem:[#allocation8 + $0x740] sm:$0xff]
    %v975 = vld [vmem:[#allocation8 + $0x748] sm:$0xff]
    %v976 = vld [vmem:[#allocation8 + $0x750] sm:$0xff]
    %v977 = vld [vmem:[#allocation8 + $0x758] sm:$0xff]
    %v978 = vld [vmem:[#allocation8 + $0x760] sm:$0xff]
    %v979 = vld [vmem:[#allocation8 + $0x768] sm:$0xff]
    %v980 = vld [vmem:[#allocation8 + $0x770] sm:$0xff]
    %v981 = vld [vmem:[#allocation8 + $0x778] sm:$0xff]
    %vm982 = vcmask 523264
    %v984 = vsel %vm982, %v589, 0
    %v987 = vsel %vm982, %v597, 0
    %v990 = vsel %vm982, %v605, 0
    %v993 = vsel %vm982, %v613, 0
    %v996 = vsel %vm982, %v621, 0
    %v999 = vsel %vm982, %v629, 0
    %v1002 = vsel %vm982, %v637, 0
    %v1005 = vsel %vm982, %v645, 0
    %v1008 = vsel %vm982, %v653, 0
    %v1011 = vsel %vm982, %v661, 0
    %v1014 = vsel %vm982, %v669, 0
    %v1017 = vsel %vm982, %v677, 0
    %v1020 = vsel %vm982, %v685, 0
    %v1023 = vsel %vm982, %v693, 0
    %v1026 = vsel %vm982, %v701, 0
    %v1029 = vsel %vm982, %v709, 0
    %v1032 = vsel %vm982, %v717, 0
    %v1035 = vsel %vm982, %v725, 0
    %v1038 = vsel %vm982, %v733, 0
    %v1041 = vsel %vm982, %v741, 0
    %1043 = vmatpush.msra.mxu0 %v772
    %1044 = vmatpush.msra.mxu0 %v770
    %1045 = vmatpush.msra.mxu0 %v768
    %1046 = vmatpush.msra.mxu0 %v766
    %1047 = vmatpush.msra.mxu0 %v764
    %1048 = vmatpush.msra.mxu0 %v762
    %1049 = vmatpush.msra.mxu0 %v760
    %1050 = vmatpush.msra.mxu0 %v758
    %1051 = vmatpush.msra.mxu0 %v756
    %1052 = vmatpush.msra.mxu0 %v754
    %1053 = vmatpush.msra.mxu0 %v752
    %1054 = vmatpush.msra.mxu0 %v750
    %1055 = vmatpush.msra.mxu0 %v748
    %1056 = vmatpush.msra.mxu0 %v746
    %1057 = vmatpush.msra.mxu0 %v744
    %1058 = vmatpush.msra.mxu0 %v742
    %1059 = vmatmul.f32.gmra.mxu0 %v582
    %v1060 = vpop.f32.mrf.mxu0
    %v1061 = vadd.f32 0.0, %v1060
    %1062 = vmatmul.f32.gmra.mxu0 %v590
    %v1063 = vpop.f32.mrf.mxu0
    %v1064 = vadd.f32 0.0, %v1063
    %1065 = vmatmul.f32.gmra.mxu0 %v598
    %v1066 = vpop.f32.mrf.mxu0
    %v1067 = vadd.f32 0.0, %v1066
    %1068 = vmatmul.f32.gmra.mxu0 %v606
    %v1069 = vpop.f32.mrf.mxu0
    %v1070 = vadd.f32 0.0, %v1069
    %1071 = vmatmul.f32.gmra.mxu0 %v614
    %v1072 = vpop.f32.mrf.mxu0
    %v1073 = vadd.f32 0.0, %v1072
    %1074 = vmatmul.f32.gmra.mxu0 %v622
    %v1075 = vpop.f32.mrf.mxu0
    %v1076 = vadd.f32 0.0, %v1075
    %1077 = vmatmul.f32.gmra.mxu0 %v630
    %v1078 = vpop.f32.mrf.mxu0
    %v1079 = vadd.f32 0.0, %v1078
    %1080 = vmatmul.f32.gmra.mxu0 %v638
    %v1081 = vpop.f32.mrf.mxu0
    %v1082 = vadd.f32 0.0, %v1081
    %1083 = vmatmul.f32.gmra.mxu0 %v646
    %v1084 = vpop.f32.mrf.mxu0
    %v1085 = vadd.f32 0.0, %v1084
    %1086 = vmatmul.f32.gmra.mxu0 %v654
    %v1087 = vpop.f32.mrf.mxu0
    %v1088 = vadd.f32 0.0, %v1087
    %1089 = vmatmul.f32.gmra.mxu0 %v662
    %v1090 = vpop.f32.mrf.mxu0
    %v1091 = vadd.f32 0.0, %v1090
    %1092 = vmatmul.f32.gmra.mxu0 %v670
    %v1093 = vpop.f32.mrf.mxu0
    %v1094 = vadd.f32 0.0, %v1093
    %1095 = vmatmul.f32.gmra.mxu0 %v678
    %v1096 = vpop.f32.mrf.mxu0
    %v1097 = vadd.f32 0.0, %v1096
    %1098 = vmatmul.f32.gmra.mxu0 %v686
    %v1099 = vpop.f32.mrf.mxu0
    %v1100 = vadd.f32 0.0, %v1099
    %1101 = vmatmul.f32.gmra.mxu0 %v694
    %v1102 = vpop.f32.mrf.mxu0
    %v1103 = vadd.f32 0.0, %v1102
    %1104 = vmatmul.f32.gmra.mxu0 %v702
    %v1105 = vpop.f32.mrf.mxu0
    %v1106 = vadd.f32 0.0, %v1105
    %1107 = vmatmul.f32.gmra.mxu0 %v710
    %v1108 = vpop.f32.mrf.mxu0
    %v1109 = vadd.f32 0.0, %v1108
    %1110 = vmatmul.f32.gmra.mxu0 %v718
    %v1111 = vpop.f32.mrf.mxu0
    %v1112 = vadd.f32 0.0, %v1111
    %1113 = vmatmul.f32.gmra.mxu0 %v726
    %v1114 = vpop.f32.mrf.mxu0
    %v1115 = vadd.f32 0.0, %v1114
    %1116 = vmatmul.f32.gmra.mxu0 %v734
    %v1117 = vpop.f32.mrf.mxu0
    %v1118 = vadd.f32 0.0, %v1117
    %1119 = vdwg.mxu0
    %1120 = vmatpush.msra.mxu0 %v804
    %1121 = vmatpush.msra.mxu0 %v802
    %1122 = vmatpush.msra.mxu0 %v800
    %1123 = vmatpush.msra.mxu0 %v798
    %1124 = vmatpush.msra.mxu0 %v796
    %1125 = vmatpush.msra.mxu0 %v794
    %1126 = vmatpush.msra.mxu0 %v792
    %1127 = vmatpush.msra.mxu0 %v790
    %1128 = vmatpush.msra.mxu0 %v788
    %1129 = vmatpush.msra.mxu0 %v786
    %1130 = vmatpush.msra.mxu0 %v784
    %1131 = vmatpush.msra.mxu0 %v782
    %1132 = vmatpush.msra.mxu0 %v780
    %1133 = vmatpush.msra.mxu0 %v778
    %1134 = vmatpush.msra.mxu0 %v776
    %1135 = vmatpush.msra.mxu0 %v774
    %1136 = vmatmul.f32.gmra.mxu0 %v583
    %v1137 = vpop.f32.mrf.mxu0
    %v1138 = vadd.f32 %v1061, %v1137
    %1139 = vmatmul.f32.gmra.mxu0 %v591
    %v1140 = vpop.f32.mrf.mxu0
    %v1141 = vadd.f32 %v1064, %v1140
    %1142 = vmatmul.f32.gmra.mxu0 %v599
    %v1143 = vpop.f32.mrf.mxu0
    %v1144 = vadd.f32 %v1067, %v1143
    %1145 = vmatmul.f32.gmra.mxu0 %v607
    %v1146 = vpop.f32.mrf.mxu0
    %v1147 = vadd.f32 %v1070, %v1146
    %1148 = vmatmul.f32.gmra.mxu0 %v615
    %v1149 = vpop.f32.mrf.mxu0
    %v1150 = vadd.f32 %v1073, %v1149
    %1151 = vmatmul.f32.gmra.mxu0 %v623
    %v1152 = vpop.f32.mrf.mxu0
    %v1153 = vadd.f32 %v1076, %v1152
    %1154 = vmatmul.f32.gmra.mxu0 %v631
    %v1155 = vpop.f32.mrf.mxu0
    %v1156 = vadd.f32 %v1079, %v1155
    %1157 = vmatmul.f32.gmra.mxu0 %v639
    %v1158 = vpop.f32.mrf.mxu0
    %v1159 = vadd.f32 %v1082, %v1158
    %1160 = vmatmul.f32.gmra.mxu0 %v647
    %v1161 = vpop.f32.mrf.mxu0
    %v1162 = vadd.f32 %v1085, %v1161
    %1163 = vmatmul.f32.gmra.mxu0 %v655
    %v1164 = vpop.f32.mrf.mxu0
    %v1165 = vadd.f32 %v1088, %v1164
    %1166 = vmatmul.f32.gmra.mxu0 %v663
    %v1167 = vpop.f32.mrf.mxu0
    %v1168 = vadd.f32 %v1091, %v1167
    %1169 = vmatmul.f32.gmra.mxu0 %v671
    %v1170 = vpop.f32.mrf.mxu0
    %v1171 = vadd.f32 %v1094, %v1170
    %1172 = vmatmul.f32.gmra.mxu0 %v679
    %v1173 = vpop.f32.mrf.mxu0
    %v1174 = vadd.f32 %v1097, %v1173
    %1175 = vmatmul.f32.gmra.mxu0 %v687
    %v1176 = vpop.f32.mrf.mxu0
    %v1177 = vadd.f32 %v1100, %v1176
    %1178 = vmatmul.f32.gmra.mxu0 %v695
    %v1179 = vpop.f32.mrf.mxu0
    %v1180 = vadd.f32 %v1103, %v1179
    %1181 = vmatmul.f32.gmra.mxu0 %v703
    %v1182 = vpop.f32.mrf.mxu0
    %v1183 = vadd.f32 %v1106, %v1182
    %1184 = vmatmul.f32.gmra.mxu0 %v711
    %v1185 = vpop.f32.mrf.mxu0
    %v1186 = vadd.f32 %v1109, %v1185
    %1187 = vmatmul.f32.gmra.mxu0 %v719
    %v1188 = vpop.f32.mrf.mxu0
    %v1189 = vadd.f32 %v1112, %v1188
    %1190 = vmatmul.f32.gmra.mxu0 %v727
    %v1191 = vpop.f32.mrf.mxu0
    %v1192 = vadd.f32 %v1115, %v1191
    %1193 = vmatmul.f32.gmra.mxu0 %v735
    %v1194 = vpop.f32.mrf.mxu0
    %v1195 = vadd.f32 %v1118, %v1194
    %1196 = vdwg.mxu0
    %1197 = vmatpush.msra.mxu0 %v836
    %1198 = vmatpush.msra.mxu0 %v834
    %1199 = vmatpush.msra.mxu0 %v832
    %1200 = vmatpush.msra.mxu0 %v830
    %1201 = vmatpush.msra.mxu0 %v828
    %1202 = vmatpush.msra.mxu0 %v826
    %1203 = vmatpush.msra.mxu0 %v824
    %1204 = vmatpush.msra.mxu0 %v822
    %1205 = vmatpush.msra.mxu0 %v820
    %1206 = vmatpush.msra.mxu0 %v818
    %1207 = vmatpush.msra.mxu0 %v816
    %1208 = vmatpush.msra.mxu0 %v814
    %1209 = vmatpush.msra.mxu0 %v812
    %1210 = vmatpush.msra.mxu0 %v810
    %1211 = vmatpush.msra.mxu0 %v808
    %1212 = vmatpush.msra.mxu0 %v806
    %1213 = vmatmul.f32.gmra.mxu0 %v584
    %v1214 = vpop.f32.mrf.mxu0
    %v1215 = vadd.f32 %v1138, %v1214
    %1216 = vmatmul.f32.gmra.mxu0 %v592
    %v1217 = vpop.f32.mrf.mxu0
    %v1218 = vadd.f32 %v1141, %v1217
    %1219 = vmatmul.f32.gmra.mxu0 %v600
    %v1220 = vpop.f32.mrf.mxu0
    %v1221 = vadd.f32 %v1144, %v1220
    %1222 = vmatmul.f32.gmra.mxu0 %v608
    %v1223 = vpop.f32.mrf.mxu0
    %v1224 = vadd.f32 %v1147, %v1223
    %1225 = vmatmul.f32.gmra.mxu0 %v616
    %v1226 = vpop.f32.mrf.mxu0
    %v1227 = vadd.f32 %v1150, %v1226
    %1228 = vmatmul.f32.gmra.mxu0 %v624
    %v1229 = vpop.f32.mrf.mxu0
    %v1230 = vadd.f32 %v1153, %v1229
    %1231 = vmatmul.f32.gmra.mxu0 %v632
    %v1232 = vpop.f32.mrf.mxu0
    %v1233 = vadd.f32 %v1156, %v1232
    %1234 = vmatmul.f32.gmra.mxu0 %v640
    %v1235 = vpop.f32.mrf.mxu0
    %v1236 = vadd.f32 %v1159, %v1235
    %1237 = vmatmul.f32.gmra.mxu0 %v648
    %v1238 = vpop.f32.mrf.mxu0
    %v1239 = vadd.f32 %v1162, %v1238
    %1240 = vmatmul.f32.gmra.mxu0 %v656
    %v1241 = vpop.f32.mrf.mxu0
    %v1242 = vadd.f32 %v1165, %v1241
    %1243 = vmatmul.f32.gmra.mxu0 %v664
    %v1244 = vpop.f32.mrf.mxu0
    %v1245 = vadd.f32 %v1168, %v1244
    %1246 = vmatmul.f32.gmra.mxu0 %v672
    %v1247 = vpop.f32.mrf.mxu0
    %v1248 = vadd.f32 %v1171, %v1247
    %1249 = vmatmul.f32.gmra.mxu0 %v680
    %v1250 = vpop.f32.mrf.mxu0
    %v1251 = vadd.f32 %v1174, %v1250
    %1252 = vmatmul.f32.gmra.mxu0 %v688
    %v1253 = vpop.f32.mrf.mxu0
    %v1254 = vadd.f32 %v1177, %v1253
    %1255 = vmatmul.f32.gmra.mxu0 %v696
    %v1256 = vpop.f32.mrf.mxu0
    %v1257 = vadd.f32 %v1180, %v1256
    %1258 = vmatmul.f32.gmra.mxu0 %v704
    %v1259 = vpop.f32.mrf.mxu0
    %v1260 = vadd.f32 %v1183, %v1259
    %1261 = vmatmul.f32.gmra.mxu0 %v712
    %v1262 = vpop.f32.mrf.mxu0
    %v1263 = vadd.f32 %v1186, %v1262
    %1264 = vmatmul.f32.gmra.mxu0 %v720
    %v1265 = vpop.f32.mrf.mxu0
    %v1266 = vadd.f32 %v1189, %v1265
    %1267 = vmatmul.f32.gmra.mxu0 %v728
    %v1268 = vpop.f32.mrf.mxu0
    %v1269 = vadd.f32 %v1192, %v1268
    %1270 = vmatmul.f32.gmra.mxu0 %v736
    %v1271 = vpop.f32.mrf.mxu0
    %v1272 = vadd.f32 %v1195, %v1271
    %1273 = vdwg.mxu0
    %1274 = vmatpush.msra.mxu0 %v868
    %1275 = vmatpush.msra.mxu0 %v866
    %1276 = vmatpush.msra.mxu0 %v864
    %1277 = vmatpush.msra.mxu0 %v862
    %1278 = vmatpush.msra.mxu0 %v860
    %1279 = vmatpush.msra.mxu0 %v858
    %1280 = vmatpush.msra.mxu0 %v856
    %1281 = vmatpush.msra.mxu0 %v854
    %1282 = vmatpush.msra.mxu0 %v852
    %1283 = vmatpush.msra.mxu0 %v850
    %1284 = vmatpush.msra.mxu0 %v848
    %1285 = vmatpush.msra.mxu0 %v846
    %1286 = vmatpush.msra.mxu0 %v844
    %1287 = vmatpush.msra.mxu0 %v842
    %1288 = vmatpush.msra.mxu0 %v840
    %1289 = vmatpush.msra.mxu0 %v838
    %1290 = vmatmul.f32.gmra.mxu0 %v585
    %v1291 = vpop.f32.mrf.mxu0
    %v1292 = vadd.f32 %v1215, %v1291
    %1293 = vmatmul.f32.gmra.mxu0 %v593
    %v1294 = vpop.f32.mrf.mxu0
    %v1295 = vadd.f32 %v1218, %v1294
    %1296 = vmatmul.f32.gmra.mxu0 %v601
    %v1297 = vpop.f32.mrf.mxu0
    %v1298 = vadd.f32 %v1221, %v1297
    %1299 = vmatmul.f32.gmra.mxu0 %v609
    %v1300 = vpop.f32.mrf.mxu0
    %v1301 = vadd.f32 %v1224, %v1300
    %1302 = vmatmul.f32.gmra.mxu0 %v617
    %v1303 = vpop.f32.mrf.mxu0
    %v1304 = vadd.f32 %v1227, %v1303
    %1305 = vmatmul.f32.gmra.mxu0 %v625
    %v1306 = vpop.f32.mrf.mxu0
    %v1307 = vadd.f32 %v1230, %v1306
    %1308 = vmatmul.f32.gmra.mxu0 %v633
    %v1309 = vpop.f32.mrf.mxu0
    %v1310 = vadd.f32 %v1233, %v1309
    %1311 = vmatmul.f32.gmra.mxu0 %v641
    %v1312 = vpop.f32.mrf.mxu0
    %v1313 = vadd.f32 %v1236, %v1312
    %1314 = vmatmul.f32.gmra.mxu0 %v649
    %v1315 = vpop.f32.mrf.mxu0
    %v1316 = vadd.f32 %v1239, %v1315
    %1317 = vmatmul.f32.gmra.mxu0 %v657
    %v1318 = vpop.f32.mrf.mxu0
    %v1319 = vadd.f32 %v1242, %v1318
    %1320 = vmatmul.f32.gmra.mxu0 %v665
    %v1321 = vpop.f32.mrf.mxu0
    %v1322 = vadd.f32 %v1245, %v1321
    %1323 = vmatmul.f32.gmra.mxu0 %v673
    %v1324 = vpop.f32.mrf.mxu0
    %v1325 = vadd.f32 %v1248, %v1324
    %1326 = vmatmul.f32.gmra.mxu0 %v681
    %v1327 = vpop.f32.mrf.mxu0
    %v1328 = vadd.f32 %v1251, %v1327
    %1329 = vmatmul.f32.gmra.mxu0 %v689
    %v1330 = vpop.f32.mrf.mxu0
    %v1331 = vadd.f32 %v1254, %v1330
    %1332 = vmatmul.f32.gmra.mxu0 %v697
    %v1333 = vpop.f32.mrf.mxu0
    %v1334 = vadd.f32 %v1257, %v1333
    %1335 = vmatmul.f32.gmra.mxu0 %v705
    %v1336 = vpop.f32.mrf.mxu0
    %v1337 = vadd.f32 %v1260, %v1336
    %1338 = vmatmul.f32.gmra.mxu0 %v713
    %v1339 = vpop.f32.mrf.mxu0
    %v1340 = vadd.f32 %v1263, %v1339
    %1341 = vmatmul.f32.gmra.mxu0 %v721
    %v1342 = vpop.f32.mrf.mxu0
    %v1343 = vadd.f32 %v1266, %v1342
    %1344 = vmatmul.f32.gmra.mxu0 %v729
    %v1345 = vpop.f32.mrf.mxu0
    %v1346 = vadd.f32 %v1269, %v1345
    %1347 = vmatmul.f32.gmra.mxu0 %v737
    %v1348 = vpop.f32.mrf.mxu0
    %v1349 = vadd.f32 %v1272, %v1348
    %1350 = vdwg.mxu0
    %1351 = vmatpush.msra.mxu0 %v900
    %1352 = vmatpush.msra.mxu0 %v898
    %1353 = vmatpush.msra.mxu0 %v896
    %1354 = vmatpush.msra.mxu0 %v894
    %1355 = vmatpush.msra.mxu0 %v892
    %1356 = vmatpush.msra.mxu0 %v890
    %1357 = vmatpush.msra.mxu0 %v888
    %1358 = vmatpush.msra.mxu0 %v886
    %1359 = vmatpush.msra.mxu0 %v884
    %1360 = vmatpush.msra.mxu0 %v882
    %1361 = vmatpush.msra.mxu0 %v880
    %1362 = vmatpush.msra.mxu0 %v878
    %1363 = vmatpush.msra.mxu0 %v876
    %1364 = vmatpush.msra.mxu0 %v874
    %1365 = vmatpush.msra.mxu0 %v872
    %1366 = vmatpush.msra.mxu0 %v870
    %1367 = vmatmul.f32.gmra.mxu0 %v586
    %v1368 = vpop.f32.mrf.mxu0
    %v1369 = vadd.f32 %v1292, %v1368
    %1370 = vmatmul.f32.gmra.mxu0 %v594
    %v1371 = vpop.f32.mrf.mxu0
    %v1372 = vadd.f32 %v1295, %v1371
    %1373 = vmatmul.f32.gmra.mxu0 %v602
    %v1374 = vpop.f32.mrf.mxu0
    %v1375 = vadd.f32 %v1298, %v1374
    %1376 = vmatmul.f32.gmra.mxu0 %v610
    %v1377 = vpop.f32.mrf.mxu0
    %v1378 = vadd.f32 %v1301, %v1377
    %1379 = vmatmul.f32.gmra.mxu0 %v618
    %v1380 = vpop.f32.mrf.mxu0
    %v1381 = vadd.f32 %v1304, %v1380
    %1382 = vmatmul.f32.gmra.mxu0 %v626
    %v1383 = vpop.f32.mrf.mxu0
    %v1384 = vadd.f32 %v1307, %v1383
    %1385 = vmatmul.f32.gmra.mxu0 %v634
    %v1386 = vpop.f32.mrf.mxu0
    %v1387 = vadd.f32 %v1310, %v1386
    %1388 = vmatmul.f32.gmra.mxu0 %v642
    %v1389 = vpop.f32.mrf.mxu0
    %v1390 = vadd.f32 %v1313, %v1389
    %1391 = vmatmul.f32.gmra.mxu0 %v650
    %v1392 = vpop.f32.mrf.mxu0
    %v1393 = vadd.f32 %v1316, %v1392
    %1394 = vmatmul.f32.gmra.mxu0 %v658
    %v1395 = vpop.f32.mrf.mxu0
    %v1396 = vadd.f32 %v1319, %v1395
    %1397 = vmatmul.f32.gmra.mxu0 %v666
    %v1398 = vpop.f32.mrf.mxu0
    %v1399 = vadd.f32 %v1322, %v1398
    %1400 = vmatmul.f32.gmra.mxu0 %v674
    %v1401 = vpop.f32.mrf.mxu0
    %v1402 = vadd.f32 %v1325, %v1401
    %1403 = vmatmul.f32.gmra.mxu0 %v682
    %v1404 = vpop.f32.mrf.mxu0
    %v1405 = vadd.f32 %v1328, %v1404
    %1406 = vmatmul.f32.gmra.mxu0 %v690
    %v1407 = vpop.f32.mrf.mxu0
    %v1408 = vadd.f32 %v1331, %v1407
    %1409 = vmatmul.f32.gmra.mxu0 %v698
    %v1410 = vpop.f32.mrf.mxu0
    %v1411 = vadd.f32 %v1334, %v1410
    %1412 = vmatmul.f32.gmra.mxu0 %v706
    %v1413 = vpop.f32.mrf.mxu0
    %v1414 = vadd.f32 %v1337, %v1413
    %1415 = vmatmul.f32.gmra.mxu0 %v714
    %v1416 = vpop.f32.mrf.mxu0
    %v1417 = vadd.f32 %v1340, %v1416
    %1418 = vmatmul.f32.gmra.mxu0 %v722
    %v1419 = vpop.f32.mrf.mxu0
    %v1420 = vadd.f32 %v1343, %v1419
    %1421 = vmatmul.f32.gmra.mxu0 %v730
    %v1422 = vpop.f32.mrf.mxu0
    %v1423 = vadd.f32 %v1346, %v1422
    %1424 = vmatmul.f32.gmra.mxu0 %v738
    %v1425 = vpop.f32.mrf.mxu0
    %v1426 = vadd.f32 %v1349, %v1425
    %1427 = vdwg.mxu0
    %1428 = vmatpush.msra.mxu0 %v932
    %1429 = vmatpush.msra.mxu0 %v930
    %1430 = vmatpush.msra.mxu0 %v928
    %1431 = vmatpush.msra.mxu0 %v926
    %1432 = vmatpush.msra.mxu0 %v924
    %1433 = vmatpush.msra.mxu0 %v922
    %1434 = vmatpush.msra.mxu0 %v920
    %1435 = vmatpush.msra.mxu0 %v918
    %1436 = vmatpush.msra.mxu0 %v916
    %1437 = vmatpush.msra.mxu0 %v914
    %1438 = vmatpush.msra.mxu0 %v912
    %1439 = vmatpush.msra.mxu0 %v910
    %1440 = vmatpush.msra.mxu0 %v908
    %1441 = vmatpush.msra.mxu0 %v906
    %1442 = vmatpush.msra.mxu0 %v904
    %1443 = vmatpush.msra.mxu0 %v902
    %1444 = vmatmul.f32.gmra.mxu0 %v587
    %v1445 = vpop.f32.mrf.mxu0
    %v1446 = vadd.f32 %v1369, %v1445
    %1447 = vmatmul.f32.gmra.mxu0 %v595
    %v1448 = vpop.f32.mrf.mxu0
    %v1449 = vadd.f32 %v1372, %v1448
    %1450 = vmatmul.f32.gmra.mxu0 %v603
    %v1451 = vpop.f32.mrf.mxu0
    %v1452 = vadd.f32 %v1375, %v1451
    %1453 = vmatmul.f32.gmra.mxu0 %v611
    %v1454 = vpop.f32.mrf.mxu0
    %v1455 = vadd.f32 %v1378, %v1454
    %1456 = vmatmul.f32.gmra.mxu0 %v619
    %v1457 = vpop.f32.mrf.mxu0
    %v1458 = vadd.f32 %v1381, %v1457
    %1459 = vmatmul.f32.gmra.mxu0 %v627
    %v1460 = vpop.f32.mrf.mxu0
    %v1461 = vadd.f32 %v1384, %v1460
    %1462 = vmatmul.f32.gmra.mxu0 %v635
    %v1463 = vpop.f32.mrf.mxu0
    %v1464 = vadd.f32 %v1387, %v1463
    %1465 = vmatmul.f32.gmra.mxu0 %v643
    %v1466 = vpop.f32.mrf.mxu0
    %v1467 = vadd.f32 %v1390, %v1466
    %1468 = vmatmul.f32.gmra.mxu0 %v651
    %v1469 = vpop.f32.mrf.mxu0
    %v1470 = vadd.f32 %v1393, %v1469
    %1471 = vmatmul.f32.gmra.mxu0 %v659
    %v1472 = vpop.f32.mrf.mxu0
    %v1473 = vadd.f32 %v1396, %v1472
    %1474 = vmatmul.f32.gmra.mxu0 %v667
    %v1475 = vpop.f32.mrf.mxu0
    %v1476 = vadd.f32 %v1399, %v1475
    %1477 = vmatmul.f32.gmra.mxu0 %v675
    %v1478 = vpop.f32.mrf.mxu0
    %v1479 = vadd.f32 %v1402, %v1478
    %1480 = vmatmul.f32.gmra.mxu0 %v683
    %v1481 = vpop.f32.mrf.mxu0
    %v1482 = vadd.f32 %v1405, %v1481
    %1483 = vmatmul.f32.gmra.mxu0 %v691
    %v1484 = vpop.f32.mrf.mxu0
    %v1485 = vadd.f32 %v1408, %v1484
    %1486 = vmatmul.f32.gmra.mxu0 %v699
    %v1487 = vpop.f32.mrf.mxu0
    %v1488 = vadd.f32 %v1411, %v1487
    %1489 = vmatmul.f32.gmra.mxu0 %v707
    %v1490 = vpop.f32.mrf.mxu0
    %v1491 = vadd.f32 %v1414, %v1490
    %1492 = vmatmul.f32.gmra.mxu0 %v715
    %v1493 = vpop.f32.mrf.mxu0
    %v1494 = vadd.f32 %v1417, %v1493
    %1495 = vmatmul.f32.gmra.mxu0 %v723
    %v1496 = vpop.f32.mrf.mxu0
    %v1497 = vadd.f32 %v1420, %v1496
    %1498 = vmatmul.f32.gmra.mxu0 %v731
    %v1499 = vpop.f32.mrf.mxu0
    %v1500 = vadd.f32 %v1423, %v1499
    %1501 = vmatmul.f32.gmra.mxu0 %v739
    %v1502 = vpop.f32.mrf.mxu0
    %v1503 = vadd.f32 %v1426, %v1502
    %1504 = vdwg.mxu0
    %1505 = vmatpush.msra.mxu0 %v964
    %1506 = vmatpush.msra.mxu0 %v962
    %1507 = vmatpush.msra.mxu0 %v960
    %1508 = vmatpush.msra.mxu0 %v958
    %1509 = vmatpush.msra.mxu0 %v956
    %1510 = vmatpush.msra.mxu0 %v954
    %1511 = vmatpush.msra.mxu0 %v952
    %1512 = vmatpush.msra.mxu0 %v950
    %1513 = vmatpush.msra.mxu0 %v948
    %1514 = vmatpush.msra.mxu0 %v946
    %1515 = vmatpush.msra.mxu0 %v944
    %1516 = vmatpush.msra.mxu0 %v942
    %1517 = vmatpush.msra.mxu0 %v940
    %1518 = vmatpush.msra.mxu0 %v938
    %1519 = vmatpush.msra.mxu0 %v936
    %1520 = vmatpush.msra.mxu0 %v934
    %1521 = vmatmul.f32.gmra.mxu0 %v588
    %v1522 = vpop.f32.mrf.mxu0
    %v1523 = vadd.f32 %v1446, %v1522
    %1524 = vmatmul.f32.gmra.mxu0 %v596
    %v1525 = vpop.f32.mrf.mxu0
    %v1526 = vadd.f32 %v1449, %v1525
    %1527 = vmatmul.f32.gmra.mxu0 %v604
    %v1528 = vpop.f32.mrf.mxu0
    %v1529 = vadd.f32 %v1452, %v1528
    %1530 = vmatmul.f32.gmra.mxu0 %v612
    %v1531 = vpop.f32.mrf.mxu0
    %v1532 = vadd.f32 %v1455, %v1531
    %1533 = vmatmul.f32.gmra.mxu0 %v620
    %v1534 = vpop.f32.mrf.mxu0
    %v1535 = vadd.f32 %v1458, %v1534
    %1536 = vmatmul.f32.gmra.mxu0 %v628
    %v1537 = vpop.f32.mrf.mxu0
    %v1538 = vadd.f32 %v1461, %v1537
    %1539 = vmatmul.f32.gmra.mxu0 %v636
    %v1540 = vpop.f32.mrf.mxu0
    %v1541 = vadd.f32 %v1464, %v1540
    %1542 = vmatmul.f32.gmra.mxu0 %v644
    %v1543 = vpop.f32.mrf.mxu0
    %v1544 = vadd.f32 %v1467, %v1543
    %1545 = vmatmul.f32.gmra.mxu0 %v652
    %v1546 = vpop.f32.mrf.mxu0
    %v1547 = vadd.f32 %v1470, %v1546
    %1548 = vmatmul.f32.gmra.mxu0 %v660
    %v1549 = vpop.f32.mrf.mxu0
    %v1550 = vadd.f32 %v1473, %v1549
    %1551 = vmatmul.f32.gmra.mxu0 %v668
    %v1552 = vpop.f32.mrf.mxu0
    %v1553 = vadd.f32 %v1476, %v1552
    %1554 = vmatmul.f32.gmra.mxu0 %v676
    %v1555 = vpop.f32.mrf.mxu0
    %v1556 = vadd.f32 %v1479, %v1555
    %1557 = vmatmul.f32.gmra.mxu0 %v684
    %v1558 = vpop.f32.mrf.mxu0
    %v1559 = vadd.f32 %v1482, %v1558
    %1560 = vmatmul.f32.gmra.mxu0 %v692
    %v1561 = vpop.f32.mrf.mxu0
    %v1562 = vadd.f32 %v1485, %v1561
    %1563 = vmatmul.f32.gmra.mxu0 %v700
    %v1564 = vpop.f32.mrf.mxu0
    %v1565 = vadd.f32 %v1488, %v1564
    %1566 = vmatmul.f32.gmra.mxu0 %v708
    %v1567 = vpop.f32.mrf.mxu0
    %v1568 = vadd.f32 %v1491, %v1567
    %1569 = vmatmul.f32.gmra.mxu0 %v716
    %v1570 = vpop.f32.mrf.mxu0
    %v1571 = vadd.f32 %v1494, %v1570
    %1572 = vmatmul.f32.gmra.mxu0 %v724
    %v1573 = vpop.f32.mrf.mxu0
    %v1574 = vadd.f32 %v1497, %v1573
    %1575 = vmatmul.f32.gmra.mxu0 %v732
    %v1576 = vpop.f32.mrf.mxu0
    %v1577 = vadd.f32 %v1500, %v1576
    %1578 = vmatmul.f32.gmra.mxu0 %v740
    %v1579 = vpop.f32.mrf.mxu0
    %v1580 = vadd.f32 %v1503, %v1579
    %1581 = vdwg.mxu0
    %1582 = vmatpush.msra.mxu0 0.0
    %1583 = vmatpush.msra.mxu0 0.0
    %1584 = vmatpush.msra.mxu0 0.0
    %1585 = vmatpush.msra.mxu0 0.0
    %1586 = vmatpush.msra.mxu0 0.0
    %1587 = vmatpush.msra.mxu0 0.0
    %1588 = vmatpush.msra.mxu0 0.0
    %1589 = vmatpush.msra.mxu0 0.0
    %1590 = vmatpush.msra.mxu0 %v980
    %1591 = vmatpush.msra.mxu0 %v978
    %1592 = vmatpush.msra.mxu0 %v976
    %1593 = vmatpush.msra.mxu0 %v974
    %1594 = vmatpush.msra.mxu0 %v972
    %1595 = vmatpush.msra.mxu0 %v970
    %1596 = vmatpush.msra.mxu0 %v968
    %1597 = vmatpush.msra.mxu0 %v966
    %1598 = vmatmul.f32.gmra.mxu0 %v984
    %v1599 = vpop.f32.mrf.mxu0
    %v1600 = vadd.f32 %v1523, %v1599
    %1601 = vmatmul.f32.gmra.mxu0 %v987
    %v1602 = vpop.f32.mrf.mxu0
    %v1603 = vadd.f32 %v1526, %v1602
    %1604 = vmatmul.f32.gmra.mxu0 %v990
    %v1605 = vpop.f32.mrf.mxu0
    %v1606 = vadd.f32 %v1529, %v1605
    %1607 = vmatmul.f32.gmra.mxu0 %v993
    %v1608 = vpop.f32.mrf.mxu0
    %v1609 = vadd.f32 %v1532, %v1608
    %1610 = vmatmul.f32.gmra.mxu0 %v996
    %v1611 = vpop.f32.mrf.mxu0
    %v1612 = vadd.f32 %v1535, %v1611
    %1613 = vmatmul.f32.gmra.mxu0 %v999
    %v1614 = vpop.f32.mrf.mxu0
    %v1615 = vadd.f32 %v1538, %v1614
    %1616 = vmatmul.f32.gmra.mxu0 %v1002
    %v1617 = vpop.f32.mrf.mxu0
    %v1618 = vadd.f32 %v1541, %v1617
    %1619 = vmatmul.f32.gmra.mxu0 %v1005
    %v1620 = vpop.f32.mrf.mxu0
    %v1621 = vadd.f32 %v1544, %v1620
    %1622 = vmatmul.f32.gmra.mxu0 %v1008
    %v1623 = vpop.f32.mrf.mxu0
    %v1624 = vadd.f32 %v1547, %v1623
    %1625 = vmatmul.f32.gmra.mxu0 %v1011
    %v1626 = vpop.f32.mrf.mxu0
    %v1627 = vadd.f32 %v1550, %v1626
    %1628 = vmatmul.f32.gmra.mxu0 %v1014
    %v1629 = vpop.f32.mrf.mxu0
    %v1630 = vadd.f32 %v1553, %v1629
    %1631 = vmatmul.f32.gmra.mxu0 %v1017
    %v1632 = vpop.f32.mrf.mxu0
    %v1633 = vadd.f32 %v1556, %v1632
    %1634 = vmatmul.f32.gmra.mxu0 %v1020
    %v1635 = vpop.f32.mrf.mxu0
    %v1636 = vadd.f32 %v1559, %v1635
    %1637 = vmatmul.f32.gmra.mxu0 %v1023
    %v1638 = vpop.f32.mrf.mxu0
    %v1639 = vadd.f32 %v1562, %v1638
    %1640 = vmatmul.f32.gmra.mxu0 %v1026
    %v1641 = vpop.f32.mrf.mxu0
    %v1642 = vadd.f32 %v1565, %v1641
    %1643 = vmatmul.f32.gmra.mxu0 %v1029
    %v1644 = vpop.f32.mrf.mxu0
    %v1645 = vadd.f32 %v1568, %v1644
    %1646 = vmatmul.f32.gmra.mxu0 %v1032
    %v1647 = vpop.f32.mrf.mxu0
    %v1648 = vadd.f32 %v1571, %v1647
    %1649 = vmatmul.f32.gmra.mxu0 %v1035
    %v1650 = vpop.f32.mrf.mxu0
    %v1651 = vadd.f32 %v1574, %v1650
    %1652 = vmatmul.f32.gmra.mxu0 %v1038
    %v1653 = vpop.f32.mrf.mxu0
    %v1654 = vadd.f32 %v1577, %v1653
    %1655 = vmatmul.f32.gmra.mxu0 %v1041
    %v1656 = vpop.f32.mrf.mxu0
    %v1657 = vadd.f32 %v1580, %v1656
    %1658 = vdwg.mxu0
    %1659 = vmatpush.msra.mxu0 %v773
    %1660 = vmatpush.msra.mxu0 %v771
    %1661 = vmatpush.msra.mxu0 %v769
    %1662 = vmatpush.msra.mxu0 %v767
    %1663 = vmatpush.msra.mxu0 %v765
    %1664 = vmatpush.msra.mxu0 %v763
    %1665 = vmatpush.msra.mxu0 %v761
    %1666 = vmatpush.msra.mxu0 %v759
    %1667 = vmatpush.msra.mxu0 %v757
    %1668 = vmatpush.msra.mxu0 %v755
    %1669 = vmatpush.msra.mxu0 %v753
    %1670 = vmatpush.msra.mxu0 %v751
    %1671 = vmatpush.msra.mxu0 %v749
    %1672 = vmatpush.msra.mxu0 %v747
    %1673 = vmatpush.msra.mxu0 %v745
    %1674 = vmatpush.msra.mxu0 %v743
    %1675 = vmatmul.f32.gmra.mxu0 %v582
    %v1676 = vpop.f32.mrf.mxu0
    %v1677 = vadd.f32 0.0, %v1676
    %1678 = vmatmul.f32.gmra.mxu0 %v590
    %v1679 = vpop.f32.mrf.mxu0
    %v1680 = vadd.f32 0.0, %v1679
    %1681 = vmatmul.f32.gmra.mxu0 %v598
    %v1682 = vpop.f32.mrf.mxu0
    %v1683 = vadd.f32 0.0, %v1682
    %1684 = vmatmul.f32.gmra.mxu0 %v606
    %v1685 = vpop.f32.mrf.mxu0
    %v1686 = vadd.f32 0.0, %v1685
    %1687 = vmatmul.f32.gmra.mxu0 %v614
    %v1688 = vpop.f32.mrf.mxu0
    %v1689 = vadd.f32 0.0, %v1688
    %1690 = vmatmul.f32.gmra.mxu0 %v622
    %v1691 = vpop.f32.mrf.mxu0
    %v1692 = vadd.f32 0.0, %v1691
    %1693 = vmatmul.f32.gmra.mxu0 %v630
    %v1694 = vpop.f32.mrf.mxu0
    %v1695 = vadd.f32 0.0, %v1694
    %1696 = vmatmul.f32.gmra.mxu0 %v638
    %v1697 = vpop.f32.mrf.mxu0
    %v1698 = vadd.f32 0.0, %v1697
    %1699 = vmatmul.f32.gmra.mxu0 %v646
    %v1700 = vpop.f32.mrf.mxu0
    %v1701 = vadd.f32 0.0, %v1700
    %1702 = vmatmul.f32.gmra.mxu0 %v654
    %v1703 = vpop.f32.mrf.mxu0
    %v1704 = vadd.f32 0.0, %v1703
    %1705 = vmatmul.f32.gmra.mxu0 %v662
    %v1706 = vpop.f32.mrf.mxu0
    %v1707 = vadd.f32 0.0, %v1706
    %1708 = vmatmul.f32.gmra.mxu0 %v670
    %v1709 = vpop.f32.mrf.mxu0
    %v1710 = vadd.f32 0.0, %v1709
    %1711 = vmatmul.f32.gmra.mxu0 %v678
    %v1712 = vpop.f32.mrf.mxu0
    %v1713 = vadd.f32 0.0, %v1712
    %1714 = vmatmul.f32.gmra.mxu0 %v686
    %v1715 = vpop.f32.mrf.mxu0
    %v1716 = vadd.f32 0.0, %v1715
    %1717 = vmatmul.f32.gmra.mxu0 %v694
    %v1718 = vpop.f32.mrf.mxu0
    %v1719 = vadd.f32 0.0, %v1718
    %1720 = vmatmul.f32.gmra.mxu0 %v702
    %v1721 = vpop.f32.mrf.mxu0
    %v1722 = vadd.f32 0.0, %v1721
    %1723 = vmatmul.f32.gmra.mxu0 %v710
    %v1724 = vpop.f32.mrf.mxu0
    %v1725 = vadd.f32 0.0, %v1724
    %1726 = vmatmul.f32.gmra.mxu0 %v718
    %v1727 = vpop.f32.mrf.mxu0
    %v1728 = vadd.f32 0.0, %v1727
    %1729 = vmatmul.f32.gmra.mxu0 %v726
    %v1730 = vpop.f32.mrf.mxu0
    %v1731 = vadd.f32 0.0, %v1730
    %1732 = vmatmul.f32.gmra.mxu0 %v734
    %v1733 = vpop.f32.mrf.mxu0
    %v1734 = vadd.f32 0.0, %v1733
    %1735 = vdwg.mxu0
    %1736 = vmatpush.msra.mxu0 %v805
    %1737 = vmatpush.msra.mxu0 %v803
    %1738 = vmatpush.msra.mxu0 %v801
    %1739 = vmatpush.msra.mxu0 %v799
    %1740 = vmatpush.msra.mxu0 %v797
    %1741 = vmatpush.msra.mxu0 %v795
    %1742 = vmatpush.msra.mxu0 %v793
    %1743 = vmatpush.msra.mxu0 %v791
    %1744 = vmatpush.msra.mxu0 %v789
    %1745 = vmatpush.msra.mxu0 %v787
    %1746 = vmatpush.msra.mxu0 %v785
    %1747 = vmatpush.msra.mxu0 %v783
    %1748 = vmatpush.msra.mxu0 %v781
    %1749 = vmatpush.msra.mxu0 %v779
    %1750 = vmatpush.msra.mxu0 %v777
    %1751 = vmatpush.msra.mxu0 %v775
    %1752 = vmatmul.f32.gmra.mxu0 %v583
    %v1753 = vpop.f32.mrf.mxu0
    %v1754 = vadd.f32 %v1677, %v1753
    %1755 = vmatmul.f32.gmra.mxu0 %v591
    %v1756 = vpop.f32.mrf.mxu0
    %v1757 = vadd.f32 %v1680, %v1756
    %1758 = vmatmul.f32.gmra.mxu0 %v599
    %v1759 = vpop.f32.mrf.mxu0
    %v1760 = vadd.f32 %v1683, %v1759
    %1761 = vmatmul.f32.gmra.mxu0 %v607
    %v1762 = vpop.f32.mrf.mxu0
    %v1763 = vadd.f32 %v1686, %v1762
    %1764 = vmatmul.f32.gmra.mxu0 %v615
    %v1765 = vpop.f32.mrf.mxu0
    %v1766 = vadd.f32 %v1689, %v1765
    %1767 = vmatmul.f32.gmra.mxu0 %v623
    %v1768 = vpop.f32.mrf.mxu0
    %v1769 = vadd.f32 %v1692, %v1768
    %1770 = vmatmul.f32.gmra.mxu0 %v631
    %v1771 = vpop.f32.mrf.mxu0
    %v1772 = vadd.f32 %v1695, %v1771
    %1773 = vmatmul.f32.gmra.mxu0 %v639
    %v1774 = vpop.f32.mrf.mxu0
    %v1775 = vadd.f32 %v1698, %v1774
    %1776 = vmatmul.f32.gmra.mxu0 %v647
    %v1777 = vpop.f32.mrf.mxu0
    %v1778 = vadd.f32 %v1701, %v1777
    %1779 = vmatmul.f32.gmra.mxu0 %v655
    %v1780 = vpop.f32.mrf.mxu0
    %v1781 = vadd.f32 %v1704, %v1780
    %1782 = vmatmul.f32.gmra.mxu0 %v663
    %v1783 = vpop.f32.mrf.mxu0
    %v1784 = vadd.f32 %v1707, %v1783
    %1785 = vmatmul.f32.gmra.mxu0 %v671
    %v1786 = vpop.f32.mrf.mxu0
    %v1787 = vadd.f32 %v1710, %v1786
    %1788 = vmatmul.f32.gmra.mxu0 %v679
    %v1789 = vpop.f32.mrf.mxu0
    %v1790 = vadd.f32 %v1713, %v1789
    %1791 = vmatmul.f32.gmra.mxu0 %v687
    %v1792 = vpop.f32.mrf.mxu0
    %v1793 = vadd.f32 %v1716, %v1792
    %1794 = vmatmul.f32.gmra.mxu0 %v695
    %v1795 = vpop.f32.mrf.mxu0
    %v1796 = vadd.f32 %v1719, %v1795
    %1797 = vmatmul.f32.gmra.mxu0 %v703
    %v1798 = vpop.f32.mrf.mxu0
    %v1799 = vadd.f32 %v1722, %v1798
    %1800 = vmatmul.f32.gmra.mxu0 %v711
    %v1801 = vpop.f32.mrf.mxu0
    %v1802 = vadd.f32 %v1725, %v1801
    %1803 = vmatmul.f32.gmra.mxu0 %v719
    %v1804 = vpop.f32.mrf.mxu0
    %v1805 = vadd.f32 %v1728, %v1804
    %1806 = vmatmul.f32.gmra.mxu0 %v727
    %v1807 = vpop.f32.mrf.mxu0
    %v1808 = vadd.f32 %v1731, %v1807
    %1809 = vmatmul.f32.gmra.mxu0 %v735
    %v1810 = vpop.f32.mrf.mxu0
    %v1811 = vadd.f32 %v1734, %v1810
    %1812 = vdwg.mxu0
    %1813 = vmatpush.msra.mxu0 %v837
    %1814 = vmatpush.msra.mxu0 %v835
    %1815 = vmatpush.msra.mxu0 %v833
    %1816 = vmatpush.msra.mxu0 %v831
    %1817 = vmatpush.msra.mxu0 %v829
    %1818 = vmatpush.msra.mxu0 %v827
    %1819 = vmatpush.msra.mxu0 %v825
    %1820 = vmatpush.msra.mxu0 %v823
    %1821 = vmatpush.msra.mxu0 %v821
    %1822 = vmatpush.msra.mxu0 %v819
    %1823 = vmatpush.msra.mxu0 %v817
    %1824 = vmatpush.msra.mxu0 %v815
    %1825 = vmatpush.msra.mxu0 %v813
    %1826 = vmatpush.msra.mxu0 %v811
    %1827 = vmatpush.msra.mxu0 %v809
    %1828 = vmatpush.msra.mxu0 %v807
    %1829 = vmatmul.f32.gmra.mxu0 %v584
    %v1830 = vpop.f32.mrf.mxu0
    %v1831 = vadd.f32 %v1754, %v1830
    %1832 = vmatmul.f32.gmra.mxu0 %v592
    %v1833 = vpop.f32.mrf.mxu0
    %v1834 = vadd.f32 %v1757, %v1833
    %1835 = vmatmul.f32.gmra.mxu0 %v600
    %v1836 = vpop.f32.mrf.mxu0
    %v1837 = vadd.f32 %v1760, %v1836
    %1838 = vmatmul.f32.gmra.mxu0 %v608
    %v1839 = vpop.f32.mrf.mxu0
    %v1840 = vadd.f32 %v1763, %v1839
    %1841 = vmatmul.f32.gmra.mxu0 %v616
    %v1842 = vpop.f32.mrf.mxu0
    %v1843 = vadd.f32 %v1766, %v1842
    %1844 = vmatmul.f32.gmra.mxu0 %v624
    %v1845 = vpop.f32.mrf.mxu0
    %v1846 = vadd.f32 %v1769, %v1845
    %1847 = vmatmul.f32.gmra.mxu0 %v632
    %v1848 = vpop.f32.mrf.mxu0
    %v1849 = vadd.f32 %v1772, %v1848
    %1850 = vmatmul.f32.gmra.mxu0 %v640
    %v1851 = vpop.f32.mrf.mxu0
    %v1852 = vadd.f32 %v1775, %v1851
    %1853 = vmatmul.f32.gmra.mxu0 %v648
    %v1854 = vpop.f32.mrf.mxu0
    %v1855 = vadd.f32 %v1778, %v1854
    %1856 = vmatmul.f32.gmra.mxu0 %v656
    %v1857 = vpop.f32.mrf.mxu0
    %v1858 = vadd.f32 %v1781, %v1857
    %1859 = vmatmul.f32.gmra.mxu0 %v664
    %v1860 = vpop.f32.mrf.mxu0
    %v1861 = vadd.f32 %v1784, %v1860
    %1862 = vmatmul.f32.gmra.mxu0 %v672
    %v1863 = vpop.f32.mrf.mxu0
    %v1864 = vadd.f32 %v1787, %v1863
    %1865 = vmatmul.f32.gmra.mxu0 %v680
    %v1866 = vpop.f32.mrf.mxu0
    %v1867 = vadd.f32 %v1790, %v1866
    %1868 = vmatmul.f32.gmra.mxu0 %v688
    %v1869 = vpop.f32.mrf.mxu0
    %v1870 = vadd.f32 %v1793, %v1869
    %1871 = vmatmul.f32.gmra.mxu0 %v696
    %v1872 = vpop.f32.mrf.mxu0
    %v1873 = vadd.f32 %v1796, %v1872
    %1874 = vmatmul.f32.gmra.mxu0 %v704
    %v1875 = vpop.f32.mrf.mxu0
    %v1876 = vadd.f32 %v1799, %v1875
    %1877 = vmatmul.f32.gmra.mxu0 %v712
    %v1878 = vpop.f32.mrf.mxu0
    %v1879 = vadd.f32 %v1802, %v1878
    %1880 = vmatmul.f32.gmra.mxu0 %v720
    %v1881 = vpop.f32.mrf.mxu0
    %v1882 = vadd.f32 %v1805, %v1881
    %1883 = vmatmul.f32.gmra.mxu0 %v728
    %v1884 = vpop.f32.mrf.mxu0
    %v1885 = vadd.f32 %v1808, %v1884
    %1886 = vmatmul.f32.gmra.mxu0 %v736
    %v1887 = vpop.f32.mrf.mxu0
    %v1888 = vadd.f32 %v1811, %v1887
    %1889 = vdwg.mxu0
    %1890 = vmatpush.msra.mxu0 %v869
    %1891 = vmatpush.msra.mxu0 %v867
    %1892 = vmatpush.msra.mxu0 %v865
    %1893 = vmatpush.msra.mxu0 %v863
    %1894 = vmatpush.msra.mxu0 %v861
    %1895 = vmatpush.msra.mxu0 %v859
    %1896 = vmatpush.msra.mxu0 %v857
    %1897 = vmatpush.msra.mxu0 %v855
    %1898 = vmatpush.msra.mxu0 %v853
    %1899 = vmatpush.msra.mxu0 %v851
    %1900 = vmatpush.msra.mxu0 %v849
    %1901 = vmatpush.msra.mxu0 %v847
    %1902 = vmatpush.msra.mxu0 %v845
    %1903 = vmatpush.msra.mxu0 %v843
    %1904 = vmatpush.msra.mxu0 %v841
    %1905 = vmatpush.msra.mxu0 %v839
    %1906 = vmatmul.f32.gmra.mxu0 %v585
    %v1907 = vpop.f32.mrf.mxu0
    %v1908 = vadd.f32 %v1831, %v1907
    %1909 = vmatmul.f32.gmra.mxu0 %v593
    %v1910 = vpop.f32.mrf.mxu0
    %v1911 = vadd.f32 %v1834, %v1910
    %1912 = vmatmul.f32.gmra.mxu0 %v601
    %v1913 = vpop.f32.mrf.mxu0
    %v1914 = vadd.f32 %v1837, %v1913
    %1915 = vmatmul.f32.gmra.mxu0 %v609
    %v1916 = vpop.f32.mrf.mxu0
    %v1917 = vadd.f32 %v1840, %v1916
    %1918 = vmatmul.f32.gmra.mxu0 %v617
    %v1919 = vpop.f32.mrf.mxu0
    %v1920 = vadd.f32 %v1843, %v1919
    %1921 = vmatmul.f32.gmra.mxu0 %v625
    %v1922 = vpop.f32.mrf.mxu0
    %v1923 = vadd.f32 %v1846, %v1922
    %1924 = vmatmul.f32.gmra.mxu0 %v633
    %v1925 = vpop.f32.mrf.mxu0
    %v1926 = vadd.f32 %v1849, %v1925
    %1927 = vmatmul.f32.gmra.mxu0 %v641
    %v1928 = vpop.f32.mrf.mxu0
    %v1929 = vadd.f32 %v1852, %v1928
    %1930 = vmatmul.f32.gmra.mxu0 %v649
    %v1931 = vpop.f32.mrf.mxu0
    %v1932 = vadd.f32 %v1855, %v1931
    %1933 = vmatmul.f32.gmra.mxu0 %v657
    %v1934 = vpop.f32.mrf.mxu0
    %v1935 = vadd.f32 %v1858, %v1934
    %1936 = vmatmul.f32.gmra.mxu0 %v665
    %v1937 = vpop.f32.mrf.mxu0
    %v1938 = vadd.f32 %v1861, %v1937
    %1939 = vmatmul.f32.gmra.mxu0 %v673
    %v1940 = vpop.f32.mrf.mxu0
    %v1941 = vadd.f32 %v1864, %v1940
    %1942 = vmatmul.f32.gmra.mxu0 %v681
    %v1943 = vpop.f32.mrf.mxu0
    %v1944 = vadd.f32 %v1867, %v1943
    %1945 = vmatmul.f32.gmra.mxu0 %v689
    %v1946 = vpop.f32.mrf.mxu0
    %v1947 = vadd.f32 %v1870, %v1946
    %1948 = vmatmul.f32.gmra.mxu0 %v697
    %v1949 = vpop.f32.mrf.mxu0
    %v1950 = vadd.f32 %v1873, %v1949
    %1951 = vmatmul.f32.gmra.mxu0 %v705
    %v1952 = vpop.f32.mrf.mxu0
    %v1953 = vadd.f32 %v1876, %v1952
    %1954 = vmatmul.f32.gmra.mxu0 %v713
    %v1955 = vpop.f32.mrf.mxu0
    %v1956 = vadd.f32 %v1879, %v1955
    %1957 = vmatmul.f32.gmra.mxu0 %v721
    %v1958 = vpop.f32.mrf.mxu0
    %v1959 = vadd.f32 %v1882, %v1958
    %1960 = vmatmul.f32.gmra.mxu0 %v729
    %v1961 = vpop.f32.mrf.mxu0
    %v1962 = vadd.f32 %v1885, %v1961
    %1963 = vmatmul.f32.gmra.mxu0 %v737
    %v1964 = vpop.f32.mrf.mxu0
    %v1965 = vadd.f32 %v1888, %v1964
    %1966 = vdwg.mxu0
    %1967 = vmatpush.msra.mxu0 %v901
    %1968 = vmatpush.msra.mxu0 %v899
    %1969 = vmatpush.msra.mxu0 %v897
    %1970 = vmatpush.msra.mxu0 %v895
    %1971 = vmatpush.msra.mxu0 %v893
    %1972 = vmatpush.msra.mxu0 %v891
    %1973 = vmatpush.msra.mxu0 %v889
    %1974 = vmatpush.msra.mxu0 %v887
    %1975 = vmatpush.msra.mxu0 %v885
    %1976 = vmatpush.msra.mxu0 %v883
    %1977 = vmatpush.msra.mxu0 %v881
    %1978 = vmatpush.msra.mxu0 %v879
    %1979 = vmatpush.msra.mxu0 %v877
    %1980 = vmatpush.msra.mxu0 %v875
    %1981 = vmatpush.msra.mxu0 %v873
    %1982 = vmatpush.msra.mxu0 %v871
    %1983 = vmatmul.f32.gmra.mxu0 %v586
    %v1984 = vpop.f32.mrf.mxu0
    %v1985 = vadd.f32 %v1908, %v1984
    %1986 = vmatmul.f32.gmra.mxu0 %v594
    %v1987 = vpop.f32.mrf.mxu0
    %v1988 = vadd.f32 %v1911, %v1987
    %1989 = vmatmul.f32.gmra.mxu0 %v602
    %v1990 = vpop.f32.mrf.mxu0
    %v1991 = vadd.f32 %v1914, %v1990
    %1992 = vmatmul.f32.gmra.mxu0 %v610
    %v1993 = vpop.f32.mrf.mxu0
    %v1994 = vadd.f32 %v1917, %v1993
    %1995 = vmatmul.f32.gmra.mxu0 %v618
    %v1996 = vpop.f32.mrf.mxu0
    %v1997 = vadd.f32 %v1920, %v1996
    %1998 = vmatmul.f32.gmra.mxu0 %v626
    %v1999 = vpop.f32.mrf.mxu0
    %v2000 = vadd.f32 %v1923, %v1999
    %2001 = vmatmul.f32.gmra.mxu0 %v634
    %v2002 = vpop.f32.mrf.mxu0
    %v2003 = vadd.f32 %v1926, %v2002
    %2004 = vmatmul.f32.gmra.mxu0 %v642
    %v2005 = vpop.f32.mrf.mxu0
    %v2006 = vadd.f32 %v1929, %v2005
    %2007 = vmatmul.f32.gmra.mxu0 %v650
    %v2008 = vpop.f32.mrf.mxu0
    %v2009 = vadd.f32 %v1932, %v2008
    %2010 = vmatmul.f32.gmra.mxu0 %v658
    %v2011 = vpop.f32.mrf.mxu0
    %v2012 = vadd.f32 %v1935, %v2011
    %2013 = vmatmul.f32.gmra.mxu0 %v666
    %v2014 = vpop.f32.mrf.mxu0
    %v2015 = vadd.f32 %v1938, %v2014
    %2016 = vmatmul.f32.gmra.mxu0 %v674
    %v2017 = vpop.f32.mrf.mxu0
    %v2018 = vadd.f32 %v1941, %v2017
    %2019 = vmatmul.f32.gmra.mxu0 %v682
    %v2020 = vpop.f32.mrf.mxu0
    %v2021 = vadd.f32 %v1944, %v2020
    %2022 = vmatmul.f32.gmra.mxu0 %v690
    %v2023 = vpop.f32.mrf.mxu0
    %v2024 = vadd.f32 %v1947, %v2023
    %2025 = vmatmul.f32.gmra.mxu0 %v698
    %v2026 = vpop.f32.mrf.mxu0
    %v2027 = vadd.f32 %v1950, %v2026
    %2028 = vmatmul.f32.gmra.mxu0 %v706
    %v2029 = vpop.f32.mrf.mxu0
    %v2030 = vadd.f32 %v1953, %v2029
    %2031 = vmatmul.f32.gmra.mxu0 %v714
    %v2032 = vpop.f32.mrf.mxu0
    %v2033 = vadd.f32 %v1956, %v2032
    %2034 = vmatmul.f32.gmra.mxu0 %v722
    %v2035 = vpop.f32.mrf.mxu0
    %v2036 = vadd.f32 %v1959, %v2035
    %2037 = vmatmul.f32.gmra.mxu0 %v730
    %v2038 = vpop.f32.mrf.mxu0
    %v2039 = vadd.f32 %v1962, %v2038
    %2040 = vmatmul.f32.gmra.mxu0 %v738
    %v2041 = vpop.f32.mrf.mxu0
    %v2042 = vadd.f32 %v1965, %v2041
    %2043 = vdwg.mxu0
    %2044 = vmatpush.msra.mxu0 %v933
    %2045 = vmatpush.msra.mxu0 %v931
    %2046 = vmatpush.msra.mxu0 %v929
    %2047 = vmatpush.msra.mxu0 %v927
    %2048 = vmatpush.msra.mxu0 %v925
    %2049 = vmatpush.msra.mxu0 %v923
    %2050 = vmatpush.msra.mxu0 %v921
    %2051 = vmatpush.msra.mxu0 %v919
    %2052 = vmatpush.msra.mxu0 %v917
    %2053 = vmatpush.msra.mxu0 %v915
    %2054 = vmatpush.msra.mxu0 %v913
    %2055 = vmatpush.msra.mxu0 %v911
    %2056 = vmatpush.msra.mxu0 %v909
    %2057 = vmatpush.msra.mxu0 %v907
    %2058 = vmatpush.msra.mxu0 %v905
    %2059 = vmatpush.msra.mxu0 %v903
    %2060 = vmatmul.f32.gmra.mxu0 %v587
    %v2061 = vpop.f32.mrf.mxu0
    %v2062 = vadd.f32 %v1985, %v2061
    %2063 = vmatmul.f32.gmra.mxu0 %v595
    %v2064 = vpop.f32.mrf.mxu0
    %v2065 = vadd.f32 %v1988, %v2064
    %2066 = vmatmul.f32.gmra.mxu0 %v603
    %v2067 = vpop.f32.mrf.mxu0
    %v2068 = vadd.f32 %v1991, %v2067
    %2069 = vmatmul.f32.gmra.mxu0 %v611
    %v2070 = vpop.f32.mrf.mxu0
    %v2071 = vadd.f32 %v1994, %v2070
    %2072 = vmatmul.f32.gmra.mxu0 %v619
    %v2073 = vpop.f32.mrf.mxu0
    %v2074 = vadd.f32 %v1997, %v2073
    %2075 = vmatmul.f32.gmra.mxu0 %v627
    %v2076 = vpop.f32.mrf.mxu0
    %v2077 = vadd.f32 %v2000, %v2076
    %2078 = vmatmul.f32.gmra.mxu0 %v635
    %v2079 = vpop.f32.mrf.mxu0
    %v2080 = vadd.f32 %v2003, %v2079
    %2081 = vmatmul.f32.gmra.mxu0 %v643
    %v2082 = vpop.f32.mrf.mxu0
    %v2083 = vadd.f32 %v2006, %v2082
    %2084 = vmatmul.f32.gmra.mxu0 %v651
    %v2085 = vpop.f32.mrf.mxu0
    %v2086 = vadd.f32 %v2009, %v2085
    %2087 = vmatmul.f32.gmra.mxu0 %v659
    %v2088 = vpop.f32.mrf.mxu0
    %v2089 = vadd.f32 %v2012, %v2088
    %2090 = vmatmul.f32.gmra.mxu0 %v667
    %v2091 = vpop.f32.mrf.mxu0
    %v2092 = vadd.f32 %v2015, %v2091
    %2093 = vmatmul.f32.gmra.mxu0 %v675
    %v2094 = vpop.f32.mrf.mxu0
    %v2095 = vadd.f32 %v2018, %v2094
    %2096 = vmatmul.f32.gmra.mxu0 %v683
    %v2097 = vpop.f32.mrf.mxu0
    %v2098 = vadd.f32 %v2021, %v2097
    %2099 = vmatmul.f32.gmra.mxu0 %v691
    %v2100 = vpop.f32.mrf.mxu0
    %v2101 = vadd.f32 %v2024, %v2100
    %2102 = vmatmul.f32.gmra.mxu0 %v699
    %v2103 = vpop.f32.mrf.mxu0
    %v2104 = vadd.f32 %v2027, %v2103
    %2105 = vmatmul.f32.gmra.mxu0 %v707
    %v2106 = vpop.f32.mrf.mxu0
    %v2107 = vadd.f32 %v2030, %v2106
    %2108 = vmatmul.f32.gmra.mxu0 %v715
    %v2109 = vpop.f32.mrf.mxu0
    %v2110 = vadd.f32 %v2033, %v2109
    %2111 = vmatmul.f32.gmra.mxu0 %v723
    %v2112 = vpop.f32.mrf.mxu0
    %v2113 = vadd.f32 %v2036, %v2112
    %2114 = vmatmul.f32.gmra.mxu0 %v731
    %v2115 = vpop.f32.mrf.mxu0
    %v2116 = vadd.f32 %v2039, %v2115
    %2117 = vmatmul.f32.gmra.mxu0 %v739
    %v2118 = vpop.f32.mrf.mxu0
    %v2119 = vadd.f32 %v2042, %v2118
    %2120 = vdwg.mxu0
    %2121 = vmatpush.msra.mxu0 %v965
    %2122 = vmatpush.msra.mxu0 %v963
    %2123 = vmatpush.msra.mxu0 %v961
    %2124 = vmatpush.msra.mxu0 %v959
    %2125 = vmatpush.msra.mxu0 %v957
    %2126 = vmatpush.msra.mxu0 %v955
    %2127 = vmatpush.msra.mxu0 %v953
    %2128 = vmatpush.msra.mxu0 %v951
    %2129 = vmatpush.msra.mxu0 %v949
    %2130 = vmatpush.msra.mxu0 %v947
    %2131 = vmatpush.msra.mxu0 %v945
    %2132 = vmatpush.msra.mxu0 %v943
    %2133 = vmatpush.msra.mxu0 %v941
    %2134 = vmatpush.msra.mxu0 %v939
    %2135 = vmatpush.msra.mxu0 %v937
    %2136 = vmatpush.msra.mxu0 %v935
    %2137 = vmatmul.f32.gmra.mxu0 %v588
    %v2138 = vpop.f32.mrf.mxu0
    %v2139 = vadd.f32 %v2062, %v2138
    %2140 = vmatmul.f32.gmra.mxu0 %v596
    %v2141 = vpop.f32.mrf.mxu0
    %v2142 = vadd.f32 %v2065, %v2141
    %2143 = vmatmul.f32.gmra.mxu0 %v604
    %v2144 = vpop.f32.mrf.mxu0
    %v2145 = vadd.f32 %v2068, %v2144
    %2146 = vmatmul.f32.gmra.mxu0 %v612
    %v2147 = vpop.f32.mrf.mxu0
    %v2148 = vadd.f32 %v2071, %v2147
    %2149 = vmatmul.f32.gmra.mxu0 %v620
    %v2150 = vpop.f32.mrf.mxu0
    %v2151 = vadd.f32 %v2074, %v2150
    %2152 = vmatmul.f32.gmra.mxu0 %v628
    %v2153 = vpop.f32.mrf.mxu0
    %v2154 = vadd.f32 %v2077, %v2153
    %2155 = vmatmul.f32.gmra.mxu0 %v636
    %v2156 = vpop.f32.mrf.mxu0
    %v2157 = vadd.f32 %v2080, %v2156
    %2158 = vmatmul.f32.gmra.mxu0 %v644
    %v2159 = vpop.f32.mrf.mxu0
    %v2160 = vadd.f32 %v2083, %v2159
    %2161 = vmatmul.f32.gmra.mxu0 %v652
    %v2162 = vpop.f32.mrf.mxu0
    %v2163 = vadd.f32 %v2086, %v2162
    %2164 = vmatmul.f32.gmra.mxu0 %v660
    %v2165 = vpop.f32.mrf.mxu0
    %v2166 = vadd.f32 %v2089, %v2165
    %2167 = vmatmul.f32.gmra.mxu0 %v668
    %v2168 = vpop.f32.mrf.mxu0
    %v2169 = vadd.f32 %v2092, %v2168
    %2170 = vmatmul.f32.gmra.mxu0 %v676
    %v2171 = vpop.f32.mrf.mxu0
    %v2172 = vadd.f32 %v2095, %v2171
    %2173 = vmatmul.f32.gmra.mxu0 %v684
    %v2174 = vpop.f32.mrf.mxu0
    %v2175 = vadd.f32 %v2098, %v2174
    %2176 = vmatmul.f32.gmra.mxu0 %v692
    %v2177 = vpop.f32.mrf.mxu0
    %v2178 = vadd.f32 %v2101, %v2177
    %2179 = vmatmul.f32.gmra.mxu0 %v700
    %v2180 = vpop.f32.mrf.mxu0
    %v2181 = vadd.f32 %v2104, %v2180
    %2182 = vmatmul.f32.gmra.mxu0 %v708
    %v2183 = vpop.f32.mrf.mxu0
    %v2184 = vadd.f32 %v2107, %v2183
    %2185 = vmatmul.f32.gmra.mxu0 %v716
    %v2186 = vpop.f32.mrf.mxu0
    %v2187 = vadd.f32 %v2110, %v2186
    %2188 = vmatmul.f32.gmra.mxu0 %v724
    %v2189 = vpop.f32.mrf.mxu0
    %v2190 = vadd.f32 %v2113, %v2189
    %2191 = vmatmul.f32.gmra.mxu0 %v732
    %v2192 = vpop.f32.mrf.mxu0
    %v2193 = vadd.f32 %v2116, %v2192
    %2194 = vmatmul.f32.gmra.mxu0 %v740
    %v2195 = vpop.f32.mrf.mxu0
    %v2196 = vadd.f32 %v2119, %v2195
    %2197 = vdwg.mxu0
    %2198 = vmatpush.msra.mxu0 0.0
    %2199 = vmatpush.msra.mxu0 0.0
    %2200 = vmatpush.msra.mxu0 0.0
    %2201 = vmatpush.msra.mxu0 0.0
    %2202 = vmatpush.msra.mxu0 0.0
    %2203 = vmatpush.msra.mxu0 0.0
    %2204 = vmatpush.msra.mxu0 0.0
    %2205 = vmatpush.msra.mxu0 0.0
    %2206 = vmatpush.msra.mxu0 %v981
    %2207 = vmatpush.msra.mxu0 %v979
    %2208 = vmatpush.msra.mxu0 %v977
    %2209 = vmatpush.msra.mxu0 %v975
    %2210 = vmatpush.msra.mxu0 %v973
    %2211 = vmatpush.msra.mxu0 %v971
    %2212 = vmatpush.msra.mxu0 %v969
    %2213 = vmatpush.msra.mxu0 %v967
    %2214 = vmatmul.f32.gmra.mxu0 %v984
    %v2215 = vpop.f32.mrf.mxu0
    %v2216 = vadd.f32 %v2139, %v2215
    %2217 = vmatmul.f32.gmra.mxu0 %v987
    %v2218 = vpop.f32.mrf.mxu0
    %v2219 = vadd.f32 %v2142, %v2218
    %2220 = vmatmul.f32.gmra.mxu0 %v990
    %v2221 = vpop.f32.mrf.mxu0
    %v2222 = vadd.f32 %v2145, %v2221
    %2223 = vmatmul.f32.gmra.mxu0 %v993
    %v2224 = vpop.f32.mrf.mxu0
    %v2225 = vadd.f32 %v2148, %v2224
    %2226 = vmatmul.f32.gmra.mxu0 %v996
    %v2227 = vpop.f32.mrf.mxu0
    %v2228 = vadd.f32 %v2151, %v2227
    %2229 = vmatmul.f32.gmra.mxu0 %v999
    %v2230 = vpop.f32.mrf.mxu0
    %v2231 = vadd.f32 %v2154, %v2230
    %2232 = vmatmul.f32.gmra.mxu0 %v1002
    %v2233 = vpop.f32.mrf.mxu0
    %v2234 = vadd.f32 %v2157, %v2233
    %2235 = vmatmul.f32.gmra.mxu0 %v1005
    %v2236 = vpop.f32.mrf.mxu0
    %v2237 = vadd.f32 %v2160, %v2236
    %2238 = vmatmul.f32.gmra.mxu0 %v1008
    %v2239 = vpop.f32.mrf.mxu0
    %v2240 = vadd.f32 %v2163, %v2239
    %2241 = vmatmul.f32.gmra.mxu0 %v1011
    %v2242 = vpop.f32.mrf.mxu0
    %v2243 = vadd.f32 %v2166, %v2242
    %2244 = vmatmul.f32.gmra.mxu0 %v1014
    %v2245 = vpop.f32.mrf.mxu0
    %v2246 = vadd.f32 %v2169, %v2245
    %2247 = vmatmul.f32.gmra.mxu0 %v1017
    %v2248 = vpop.f32.mrf.mxu0
    %v2249 = vadd.f32 %v2172, %v2248
    %2250 = vmatmul.f32.gmra.mxu0 %v1020
    %v2251 = vpop.f32.mrf.mxu0
    %v2252 = vadd.f32 %v2175, %v2251
    %2253 = vmatmul.f32.gmra.mxu0 %v1023
    %v2254 = vpop.f32.mrf.mxu0
    %v2255 = vadd.f32 %v2178, %v2254
    %2256 = vmatmul.f32.gmra.mxu0 %v1026
    %v2257 = vpop.f32.mrf.mxu0
    %v2258 = vadd.f32 %v2181, %v2257
    %2259 = vmatmul.f32.gmra.mxu0 %v1029
    %v2260 = vpop.f32.mrf.mxu0
    %v2261 = vadd.f32 %v2184, %v2260
    %2262 = vmatmul.f32.gmra.mxu0 %v1032
    %v2263 = vpop.f32.mrf.mxu0
    %v2264 = vadd.f32 %v2187, %v2263
    %2265 = vmatmul.f32.gmra.mxu0 %v1035
    %v2266 = vpop.f32.mrf.mxu0
    %v2267 = vadd.f32 %v2190, %v2266
    %2268 = vmatmul.f32.gmra.mxu0 %v1038
    %v2269 = vpop.f32.mrf.mxu0
    %v2270 = vadd.f32 %v2193, %v2269
    %2271 = vmatmul.f32.gmra.mxu0 %v1041
    %v2272 = vpop.f32.mrf.mxu0
    %v2273 = vadd.f32 %v2196, %v2272
    %2274 = vdwg.mxu0
    %2275 = vst [vmem:[#allocation9] sm:$0xff] %v1600
    %2276 = vst [vmem:[#allocation9 + $0x8] sm:$0xff] %v2216
    %2277 = vst [vmem:[#allocation9 + $0x10] sm:$0xff] %v1603
    %2278 = vst [vmem:[#allocation9 + $0x18] sm:$0xff] %v2219
    %2279 = vst [vmem:[#allocation9 + $0x20] sm:$0xff] %v1606
    %2280 = vst [vmem:[#allocation9 + $0x28] sm:$0xff] %v2222
    %2281 = vst [vmem:[#allocation9 + $0x30] sm:$0xff] %v1609
    %2282 = vst [vmem:[#allocation9 + $0x38] sm:$0xff] %v2225
    %2283 = vst [vmem:[#allocation9 + $0x40] sm:$0xff] %v1612
    %2284 = vst [vmem:[#allocation9 + $0x48] sm:$0xff] %v2228
    %2285 = vst [vmem:[#allocation9 + $0x50] sm:$0xff] %v1615
    %2286 = vst [vmem:[#allocation9 + $0x58] sm:$0xff] %v2231
    %2287 = vst [vmem:[#allocation9 + $0x60] sm:$0xff] %v1618
    %2288 = vst [vmem:[#allocation9 + $0x68] sm:$0xff] %v2234
    %2289 = vst [vmem:[#allocation9 + $0x70] sm:$0xff] %v1621
    %2290 = vst [vmem:[#allocation9 + $0x78] sm:$0xff] %v2237
    %2291 = vst [vmem:[#allocation9 + $0x80] sm:$0xff] %v1624
    %2292 = vst [vmem:[#allocation9 + $0x88] sm:$0xff] %v2240
    %2293 = vst [vmem:[#allocation9 + $0x90] sm:$0xff] %v1627
    %2294 = vst [vmem:[#allocation9 + $0x98] sm:$0xff] %v2243
    %2295 = vst [vmem:[#allocation9 + $0xa0] sm:$0xff] %v1630
    %2296 = vst [vmem:[#allocation9 + $0xa8] sm:$0xff] %v2246
    %2297 = vst [vmem:[#allocation9 + $0xb0] sm:$0xff] %v1633
    %2298 = vst [vmem:[#allocation9 + $0xb8] sm:$0xff] %v2249
    %2299 = vst [vmem:[#allocation9 + $0xc0] sm:$0xff] %v1636
    %2300 = vst [vmem:[#allocation9 + $0xc8] sm:$0xff] %v2252
    %2301 = vst [vmem:[#allocation9 + $0xd0] sm:$0xff] %v1639
    %2302 = vst [vmem:[#allocation9 + $0xd8] sm:$0xff] %v2255
    %2303 = vst [vmem:[#allocation9 + $0xe0] sm:$0xff] %v1642
    %2304 = vst [vmem:[#allocation9 + $0xe8] sm:$0xff] %v2258
    %2305 = vst [vmem:[#allocation9 + $0xf0] sm:$0xff] %v1645
    %2306 = vst [vmem:[#allocation9 + $0xf8] sm:$0xff] %v2261
    %2307 = vst [vmem:[#allocation9 + $0x100] sm:$0xff] %v1648
    %2308 = vst [vmem:[#allocation9 + $0x108] sm:$0xff] %v2264
    %2309 = vst [vmem:[#allocation9 + $0x110] sm:$0xff] %v1651
    %2310 = vst [vmem:[#allocation9 + $0x118] sm:$0xff] %v2267
    %2311 = vst [vmem:[#allocation9 + $0x120] sm:$0xff] %v1654
    %2312 = vst [vmem:[#allocation9 + $0x128] sm:$0xff] %v2270
    %2313 = vst [vmem:[#allocation9 + $0x130] sm:$0xff] %v1657
    %2314 = vst [vmem:[#allocation9 + $0x138] sm:$0xff] %v2273
    // Predicated region
    $region30: #{tpu_custom_call.1} parent=1 // pred_check
      _
    $region31: #{tpu_custom_call.1} parent=1 // pred_check_branch
      %2316 = sbr.rel (0) target = $region33
    $region32: #{tpu_custom_call.1} parent=1 // pred_region
      %2318 = vsyncadd [#allocation5], 0
      %s2319 = sshll.u32 [#allocation9], 4
      %s2320 = int_to_ptr.vmem [resolvable:$true] %s2319
      %s2321 = sshll.u32 %s3, 4
      %s2322 = int_to_ptr.hbm [resolvable:$true] %s2321
      %2327 = dma.vmem_to_hbm [thread:$0]  %s2320, 5120, %s2322, [#allocation5], 256, 256, 16
    $region33: #{tpu_custom_call.1} parent=1 // pred_fallthru
      _
    // Predicated region
    $region34: #{tpu_custom_call.1} parent=1 // pred_check
      _
    $region35: #{tpu_custom_call.1} parent=1 // pred_check_branch
      %2329 = sbr.rel (0) target = $region37
    $region36: #{tpu_custom_call.1} parent=1 // pred_region
      %2331 = dma.done [#allocation5], 5120
    $region37: #{tpu_custom_call.1} parent=1 // pred_fallthru
      _
    %2332 = vsyncpa [#allocation4], 1
    %2333 = vsyncpa [#allocation7], 1
    %2334 = vsyncpa [#allocation5], 1

</llo_original>
